<compile_context>
chip_gen: v7x
topology: tpu7x:2x2x1
jax: 0.10.0
libtpu: 0.0.40
codegen_flags: <defaults>
</compile_context>

<pallas_src>
import jax
import jax.numpy as jnp
from jax.experimental import pallas as pl
from jax.experimental.pallas import tpu as pltpu

# Below this fan-in, layer 1 is computed on the VPU (outer-product FMA) and its
# weight stays f32; at/above it, layer 1 uses a bf16 MXU dot like layers 2/3.
_SMALL_FAN_IN = 32


def _round_up(n, m):
    return ((n + m - 1) // m) * m


def _sigmoid(x):
    # sigmoid via EUP exp + approximate reciprocal (keeps the divide off the
    # VPU), with one Newton step so accuracy stays ~f32.  Clamp so exp(-x)
    # never overflows to inf (which would NaN the Newton refinement).
    e = jnp.exp(-jnp.maximum(x, -60.0))
    d = 1.0 + e
    r = pl.reciprocal(d, approx=True)
    return r * (2.0 - d * r)


def _fused_mlp_kernel(x_ref, w1_ref, b1_ref, w2_ref, b2_ref, w3_ref, b3_ref,
                      wh_ref, bh_ref, o_ref):
    TB = x_ref.shape[0]
    F = x_ref.shape[-1]

    # ---- layer 1 ----
    if F <= _SMALL_FAN_IN:
        # Tiny fan-in: a K=F matmul wastes a full MXU push set at ~F/128
        # utilization, so do F broadcast-FMA terms on the VPU instead (f32).
        M1 = w1_ref.shape[1]
        h = jnp.broadcast_to(b1_ref[...], (TB, M1))
        for k in range(F):
            h = h + x_ref[:, k:k + 1] * w1_ref[k:k + 1, :]
    else:
        h = jnp.dot(x_ref[...].astype(jnp.bfloat16), w1_ref[...],
                    preferred_element_type=jnp.float32) + b1_ref[...]
    h = jnp.maximum(h, 0.0)

    # ---- layers 2 / 3: bf16 MXU matmuls, f32 accumulate / bias / ReLU ----
    h = jnp.dot(h.astype(jnp.bfloat16), w2_ref[...],
                preferred_element_type=jnp.float32) + b2_ref[...]
    h = jnp.maximum(h, 0.0)
    h = jnp.dot(h.astype(jnp.bfloat16), w3_ref[...],
                preferred_element_type=jnp.float32) + b3_ref[...]
    h = jnp.maximum(h, 0.0)

    # ---- fused head: [base | constraint] in a single dot ----
    head = jnp.dot(h.astype(jnp.bfloat16), wh_ref[...],
                   preferred_element_type=jnp.float32) + bh_ref[...]   # [TB, 1+C]

    C = o_ref.shape[-1]
    base = head[:, 0:1]                 # [TB, 1]
    cons = head[:, 1:1 + C]             # [TB, C]

    out0 = _sigmoid(base)               # [TB, 1]

    # Fused epilogue of the PyTorch python loop: column i needs the *exclusive*
    # prefix sum of |constraint| over j < i.  C is tiny and static, so build it
    # with C-1 masked adds on the VPU (no MXU, stays f32).
    abs_c = jnp.abs(cons)
    lane = jax.lax.broadcasted_iota(jnp.int32, abs_c.shape, 1)
    cum = jnp.zeros_like(abs_c)
    for j in range(C - 1):
        cum = cum + jnp.where(lane > j, abs_c[:, j:j + 1], 0.0)

    out0_b = jnp.broadcast_to(out0, abs_c.shape)
    blended = out0_b + _sigmoid(cum) * (1.0 - out0_b)        # columns i >= 1
    o_ref[...] = jnp.where(lane == 0, out0_b, blended).astype(o_ref.dtype)


def _choose_batch_tile(B, block_b):
    B8 = _round_up(B, 8)
    blk = max(8, _round_up(block_b, 8))
    if B8 <= blk:
        # Small/medium batch fits a single tile: split it in two so v7x's two
        # TensorCores both get a grid step under ("parallel",) semantics.
        TB = max(8, _round_up(pl.cdiv(B8, 2), 8))
    else:
        TB = blk
    Bp = _round_up(B8, TB)
    return TB, Bp


def ram_mlp_special_arc_forward(x, params, *, block_b=2048):
    """x: [B, ...] (flattened like x.view(x.size(0), -1)).  Returns [B, num_classes]."""
    B = x.shape[0]
    x2 = x.reshape(B, -1).astype(jnp.float32)
    F = x2.shape[1]

    (w1, b1), (w2, b2), (w3, b3), (wb, bb), (wc, bc) = params
    C = wc.shape[1]

    # bf16 trunk weights (MXU native on v5e/v6e/v7x); layer-1 weight stays f32
    # when it runs on the VPU.  Biases stay f32.  (In a real model these casts
    # would be done once at load time.)
    w1c = w1.astype(jnp.float32 if F <= _SMALL_FAN_IN else jnp.bfloat16)
    w2c = w2.astype(jnp.bfloat16)
    w3c = w3.astype(jnp.bfloat16)
    b1c = b1.astype(jnp.float32)
    b2c = b2.astype(jnp.float32)
    b3c = b3.astype(jnp.float32)
    # Fuse the two heads: one [M, 1+C] matmul instead of N=1 and N=C dots.
    wh = jnp.concatenate([wb, wc], axis=1).astype(jnp.bfloat16)     # [M, 1+C]
    bh = jnp.concatenate([bb, bc], axis=1).astype(jnp.float32)      # [1, 1+C]

    TB, Bp = _choose_batch_tile(B, block_b)
    if Bp != B:
        x2 = jnp.pad(x2, ((0, Bp - B), (0, 0)))     # pad tail tile; sliced off below

    def resident(a):
        # Same block index every grid step => block stays VMEM-resident (no re-DMA).
        return pl.BlockSpec(a.shape, lambda i: (0,) * a.ndim)

    weights = (w1c, b1c, w2c, b2c, w3c, b3c, wh, bh)
    in_specs = [pl.BlockSpec((TB, F), lambda i: (i, 0))] + [resident(a) for a in weights]

    out = pl.pallas_call(
        _fused_mlp_kernel,
        out_shape=jax.ShapeDtypeStruct((Bp, C), jnp.float32),
        grid=(Bp // TB,),
        in_specs=in_specs,
        out_specs=pl.BlockSpec((TB, C), lambda i: (i, 0)),
        compiler_params=pltpu.CompilerParams(
            dimension_semantics=("parallel",),       # shard batch tiles across TCs (v7x)
            vmem_limit_bytes=32 * 1024 * 1024),      # TB=2048 budget also fits v5e/v7x
    )(x2, *weights)
    return out[:B]


def init_params(key, input_size=2, middle_layer_size=256, num_classes=1):
    """nn.Linear-style init; weights stored [in, out] (PyTorch W.T), biases [1, out]."""
    m = middle_layer_size
    shapes = [(input_size, m), (m, 2 * m), (2 * m, m), (m, 1), (m, num_classes)]
    params = []
    for fan_in, fan_out in shapes:
        key, kw, kb = jax.random.split(key, 3)
        bound = 1.0 / float(fan_in) ** 0.5
        w = jax.random.uniform(kw, (fan_in, fan_out), jnp.float32, -bound, bound)
        b = jax.random.uniform(kb, (1, fan_out), jnp.float32, -bound, bound)
        params.append((w, b))
    return params


def reference_forward(x, params):
    """Pure-JAX f32 reference mirroring the PyTorch forward (incl. the python loop)."""
    B = x.shape[0]
    h = x.reshape(B, -1).astype(jnp.float32)
    (w1, b1), (w2, b2), (w3, b3), (wb, bb), (wc, bc) = params
    h = jnp.maximum(h @ w1 + b1, 0.0)
    h = jnp.maximum(h @ w2 + b2, 0.0)
    h = jnp.maximum(h @ w3 + b3, 0.0)
    base = jax.nn.sigmoid(h @ wb + bb)      # [B, 1]
    cons = h @ wc + bc                      # [B, C]
    C = cons.shape[1]
    cols = [base[:, 0]]
    for i in range(1, C):
        s = jnp.sum(jnp.abs(cons[:, 0:i]), axis=1)
        cols.append(base[:, 0] + jax.nn.sigmoid(s) * (1.0 - base[:, 0]))
    return jnp.stack(cols, axis=1)


if __name__ == "__main__":
    key = jax.random.PRNGKey(0)
    k_x, k_p = jax.random.split(key)

    # Small shapes consistent with the module defaults: input_size=2,
    # middle_layer_size=256; num_classes=4 exercises the epilogue loop.
    batch, input_size, middle, num_classes = 200, 2, 256, 4
    x = jax.random.normal(k_x, (batch, input_size), jnp.float32)
    params = init_params(k_p, input_size=input_size,
                         middle_layer_size=middle, num_classes=num_classes)

    # Default block_b: batch splits into two tiles of 104 rows (padded to 208),
    # exercising the pipelined grid, tail padding, and the 2-TC split path.
    out = ram_mlp_special_arc_forward(x, params)
    out = jax.block_until_ready(out)

    ref = reference_forward(x, params)
    assert out.shape == (batch, num_classes)
    # Tolerance relaxed vs the f32 reference because the trunk matmuls run in
    # bf16 (f32 accumulate); observed error is well below this.
    assert jnp.allclose(out, ref, atol=2e-2, rtol=2e-2), "mismatch vs JAX reference"

    print("KERNEL_OK")
</pallas_src>

<mosaic_0001>
module attributes {stable_mosaic.version = 11 : i64} {
  func.func @_fused_mlp_kernel(%arg0: i32, %arg1: memref<104x2xf32, #tpu.memory_space<vmem>>, %arg2: memref<2x256xf32, #tpu.memory_space<vmem>>, %arg3: memref<1x256xf32, #tpu.memory_space<vmem>>, %arg4: memref<256x512xbf16, #tpu.memory_space<vmem>>, %arg5: memref<1x512xf32, #tpu.memory_space<vmem>>, %arg6: memref<512x256xbf16, #tpu.memory_space<vmem>>, %arg7: memref<1x256xf32, #tpu.memory_space<vmem>>, %arg8: memref<256x5xbf16, #tpu.memory_space<vmem>>, %arg9: memref<1x5xf32, #tpu.memory_space<vmem>>, %arg10: memref<104x4xf32, #tpu.memory_space<vmem>>) attributes {dimension_semantics = [#tpu.dimension_semantics<parallel>], iteration_bounds = array<i64: 2>, scalar_prefetch = 0 : i64, scratch_operands = 0 : i64, tpu.core_type = #tpu.core_type<tc>, window_params = [{transform_indices = @transform_0, window_bounds = array<i64: 104, 2>}, {pipeline_mode = #tpu.pipeline_mode<synchronous>, transform_indices = @transform_1, window_bounds = array<i64: 2, 256>}, {pipeline_mode = #tpu.pipeline_mode<synchronous>, transform_indices = @transform_2, window_bounds = array<i64: 1, 256>}, {pipeline_mode = #tpu.pipeline_mode<synchronous>, transform_indices = @transform_3, window_bounds = array<i64: 256, 512>}, {pipeline_mode = #tpu.pipeline_mode<synchronous>, transform_indices = @transform_4, window_bounds = array<i64: 1, 512>}, {pipeline_mode = #tpu.pipeline_mode<synchronous>, transform_indices = @transform_5, window_bounds = array<i64: 512, 256>}, {pipeline_mode = #tpu.pipeline_mode<synchronous>, transform_indices = @transform_6, window_bounds = array<i64: 1, 256>}, {pipeline_mode = #tpu.pipeline_mode<synchronous>, transform_indices = @transform_7, window_bounds = array<i64: 256, 5>}, {pipeline_mode = #tpu.pipeline_mode<synchronous>, transform_indices = @transform_8, window_bounds = array<i64: 1, 5>}, {transform_indices = @transform_9, window_bounds = array<i64: 104, 4>}]} {
    %c0 = arith.constant 0 : index
    %c0_0 = arith.constant 0 : index
    %0 = vector.load %arg3[%c0, %c0_0] : memref<1x256xf32, #tpu.memory_space<vmem>>, vector<1x256xf32>
    %1 = vector.shape_cast %0 : vector<1x256xf32> to vector<1x256xf32>
    %2 = vector.broadcast %1 : vector<1x256xf32> to vector<104x256xf32>
    %c0_1 = arith.constant 0 : index
    %c0_2 = arith.constant 0 : index
    %3 = vector.load %arg1[%c0_1, %c0_2] : memref<104x2xf32, #tpu.memory_space<vmem>>, vector<104x1xf32>
    %c0_3 = arith.constant 0 : index
    %c0_4 = arith.constant 0 : index
    %4 = vector.load %arg2[%c0_3, %c0_4] : memref<2x256xf32, #tpu.memory_space<vmem>>, vector<1x256xf32>
    %5 = vector.broadcast %3 : vector<104x1xf32> to vector<104x256xf32>
    %6 = vector.broadcast %4 : vector<1x256xf32> to vector<104x256xf32>
    %7 = arith.mulf %5, %6 : vector<104x256xf32>
    %8 = arith.addf %2, %7 : vector<104x256xf32>
    %c0_5 = arith.constant 0 : index
    %c1 = arith.constant 1 : index
    %9 = vector.load %arg1[%c0_5, %c1] : memref<104x2xf32, #tpu.memory_space<vmem>>, vector<104x1xf32>
    %c1_6 = arith.constant 1 : index
    %c0_7 = arith.constant 0 : index
    %10 = vector.load %arg2[%c1_6, %c0_7] : memref<2x256xf32, #tpu.memory_space<vmem>>, vector<1x256xf32>
    %11 = vector.broadcast %9 : vector<104x1xf32> to vector<104x256xf32>
    %12 = vector.broadcast %10 : vector<1x256xf32> to vector<104x256xf32>
    %13 = arith.mulf %11, %12 : vector<104x256xf32>
    %14 = arith.addf %8, %13 : vector<104x256xf32>
    %cst = arith.constant 0.000000e+00 : f32
    %15 = vector.broadcast %cst : f32 to vector<104x256xf32>
    %16 = arith.maximumf %14, %15 : vector<104x256xf32>
    %17 = arith.truncf %16 : vector<104x256xf32> to vector<104x256xbf16>
    %c0_8 = arith.constant 0 : index
    %c0_9 = arith.constant 0 : index
    %18 = vector.load %arg4[%c0_8, %c0_9] : memref<256x512xbf16, #tpu.memory_space<vmem>>, vector<256x512xbf16>
    %cst_10 = arith.constant dense<0.000000e+00> : vector<104x512xf32>
    %19 = tpu.matmul %17, %18, %cst_10 {dimension_numbers = #tpu.dot_dimension_numbers<[1], [0], [0], [1], [0, 0, 1, 1], [], []>} : vector<104x256xbf16>, vector<256x512xbf16>, vector<104x512xf32> -> vector<104x512xf32>
    %c0_11 = arith.constant 0 : index
    %c0_12 = arith.constant 0 : index
    %20 = vector.load %arg5[%c0_11, %c0_12] : memref<1x512xf32, #tpu.memory_space<vmem>>, vector<1x512xf32>
    %21 = vector.broadcast %20 : vector<1x512xf32> to vector<104x512xf32>
    %22 = arith.addf %19, %21 : vector<104x512xf32>
    %cst_13 = arith.constant 0.000000e+00 : f32
    %23 = vector.broadcast %cst_13 : f32 to vector<104x512xf32>
    %24 = arith.maximumf %22, %23 : vector<104x512xf32>
    %25 = arith.truncf %24 : vector<104x512xf32> to vector<104x512xbf16>
    %c0_14 = arith.constant 0 : index
    %c0_15 = arith.constant 0 : index
    %26 = vector.load %arg6[%c0_14, %c0_15] : memref<512x256xbf16, #tpu.memory_space<vmem>>, vector<512x256xbf16>
    %cst_16 = arith.constant dense<0.000000e+00> : vector<104x256xf32>
    %27 = tpu.matmul %25, %26, %cst_16 {dimension_numbers = #tpu.dot_dimension_numbers<[1], [0], [0], [1], [0, 0, 1, 1], [], []>} : vector<104x512xbf16>, vector<512x256xbf16>, vector<104x256xf32> -> vector<104x256xf32>
    %c0_17 = arith.constant 0 : index
    %c0_18 = arith.constant 0 : index
    %28 = vector.load %arg7[%c0_17, %c0_18] : memref<1x256xf32, #tpu.memory_space<vmem>>, vector<1x256xf32>
    %29 = vector.broadcast %28 : vector<1x256xf32> to vector<104x256xf32>
    %30 = arith.addf %27, %29 : vector<104x256xf32>
    %cst_19 = arith.constant 0.000000e+00 : f32
    %31 = vector.broadcast %cst_19 : f32 to vector<104x256xf32>
    %32 = arith.maximumf %30, %31 : vector<104x256xf32>
    %33 = arith.truncf %32 : vector<104x256xf32> to vector<104x256xbf16>
    %c0_20 = arith.constant 0 : index
    %c0_21 = arith.constant 0 : index
    %34 = vector.load %arg8[%c0_20, %c0_21] : memref<256x5xbf16, #tpu.memory_space<vmem>>, vector<256x5xbf16>
    %cst_22 = arith.constant dense<0.000000e+00> : vector<104x5xf32>
    %35 = tpu.matmul %33, %34, %cst_22 {dimension_numbers = #tpu.dot_dimension_numbers<[1], [0], [0], [1], [0, 0, 1, 1], [], []>} : vector<104x256xbf16>, vector<256x5xbf16>, vector<104x5xf32> -> vector<104x5xf32>
    %c0_23 = arith.constant 0 : index
    %c0_24 = arith.constant 0 : index
    %36 = vector.load %arg9[%c0_23, %c0_24] : memref<1x5xf32, #tpu.memory_space<vmem>>, vector<1x5xf32>
    %37 = vector.broadcast %36 : vector<1x5xf32> to vector<104x5xf32>
    %38 = arith.addf %35, %37 : vector<104x5xf32>
    %39 = vector.extract_strided_slice %38 {offsets = [0, 0], sizes = [104, 1], strides = [1, 1]} : vector<104x5xf32> to vector<104x1xf32>
    %40 = vector.extract_strided_slice %38 {offsets = [0, 1], sizes = [104, 4], strides = [1, 1]} : vector<104x5xf32> to vector<104x4xf32>
    %cst_25 = arith.constant -6.000000e+01 : f32
    %41 = vector.broadcast %cst_25 : f32 to vector<104x1xf32>
    %42 = arith.maximumf %39, %41 : vector<104x1xf32>
    %cst_26 = arith.constant 0.000000e+00 : f32
    %43 = vector.broadcast %cst_26 : f32 to vector<104x1xf32>
    %44 = arith.subf %43, %42 : vector<104x1xf32>
    %45 = math.exp %44 : vector<104x1xf32>
    %cst_27 = arith.constant 1.000000e+00 : f32
    %46 = vector.broadcast %cst_27 : f32 to vector<104x1xf32>
    %47 = arith.addf %46, %45 : vector<104x1xf32>
    %48 = tpu.reciprocal %47 {approx = true} : vector<104x1xf32> -> vector<104x1xf32>
    %49 = arith.mulf %47, %48 : vector<104x1xf32>
    %cst_28 = arith.constant 2.000000e+00 : f32
    %50 = vector.broadcast %cst_28 : f32 to vector<104x1xf32>
    %51 = arith.subf %50, %49 : vector<104x1xf32>
    %52 = arith.mulf %48, %51 : vector<104x1xf32>
    %53 = math.absf %40 : vector<104x4xf32>
    %54 = tpu.iota {dimensions = array<i32: 1>} : vector<104x4xi32>
    %cst_29 = arith.constant 0.000000e+00 : f32
    %55 = vector.broadcast %cst_29 : f32 to vector<104x4xf32>
    %c0_i32 = arith.constant 0 : i32
    %56 = vector.broadcast %c0_i32 : i32 to vector<104x4xi32>
    %57 = arith.cmpi sgt, %54, %56 : vector<104x4xi32>
    %58 = vector.extract_strided_slice %53 {offsets = [0, 0], sizes = [104, 1], strides = [1, 1]} : vector<104x4xf32> to vector<104x1xf32>
    %cst_30 = arith.constant 0.000000e+00 : f32
    %59 = vector.shape_cast %58 : vector<104x1xf32> to vector<104x1xf32>
    %60 = vector.broadcast %59 : vector<104x1xf32> to vector<104x4xf32>
    %61 = vector.broadcast %cst_30 : f32 to vector<104x4xf32>
    %62 = arith.select %57, %60, %61 : vector<104x4xi1>, vector<104x4xf32>
    %63 = arith.addf %55, %62 : vector<104x4xf32>
    %c1_i32 = arith.constant 1 : i32
    %64 = vector.broadcast %c1_i32 : i32 to vector<104x4xi32>
    %65 = arith.cmpi sgt, %54, %64 : vector<104x4xi32>
    %66 = vector.extract_strided_slice %53 {offsets = [0, 1], sizes = [104, 1], strides = [1, 1]} : vector<104x4xf32> to vector<104x1xf32>
    %cst_31 = arith.constant 0.000000e+00 : f32
    %67 = vector.shape_cast %66 : vector<104x1xf32> to vector<104x1xf32>
    %68 = vector.broadcast %67 : vector<104x1xf32> to vector<104x4xf32>
    %69 = vector.broadcast %cst_31 : f32 to vector<104x4xf32>
    %70 = arith.select %65, %68, %69 : vector<104x4xi1>, vector<104x4xf32>
    %71 = arith.addf %63, %70 : vector<104x4xf32>
    %c2_i32 = arith.constant 2 : i32
    %72 = vector.broadcast %c2_i32 : i32 to vector<104x4xi32>
    %73 = arith.cmpi sgt, %54, %72 : vector<104x4xi32>
    %74 = vector.extract_strided_slice %53 {offsets = [0, 2], sizes = [104, 1], strides = [1, 1]} : vector<104x4xf32> to vector<104x1xf32>
    %cst_32 = arith.constant 0.000000e+00 : f32
    %75 = vector.shape_cast %74 : vector<104x1xf32> to vector<104x1xf32>
    %76 = vector.broadcast %75 : vector<104x1xf32> to vector<104x4xf32>
    %77 = vector.broadcast %cst_32 : f32 to vector<104x4xf32>
    %78 = arith.select %73, %76, %77 : vector<104x4xi1>, vector<104x4xf32>
    %79 = arith.addf %71, %78 : vector<104x4xf32>
    %80 = vector.shape_cast %52 : vector<104x1xf32> to vector<104x1xf32>
    %81 = vector.broadcast %80 : vector<104x1xf32> to vector<104x4xf32>
    %cst_33 = arith.constant -6.000000e+01 : f32
    %82 = vector.broadcast %cst_33 : f32 to vector<104x4xf32>
    %83 = arith.maximumf %79, %82 : vector<104x4xf32>
    %cst_34 = arith.constant 0.000000e+00 : f32
    %84 = vector.broadcast %cst_34 : f32 to vector<104x4xf32>
    %85 = arith.subf %84, %83 : vector<104x4xf32>
    %86 = math.exp %85 : vector<104x4xf32>
    %cst_35 = arith.constant 1.000000e+00 : f32
    %87 = vector.broadcast %cst_35 : f32 to vector<104x4xf32>
    %88 = arith.addf %87, %86 : vector<104x4xf32>
    %89 = tpu.reciprocal %88 {approx = true} : vector<104x4xf32> -> vector<104x4xf32>
    %90 = arith.mulf %88, %89 : vector<104x4xf32>
    %cst_36 = arith.constant 2.000000e+00 : f32
    %91 = vector.broadcast %cst_36 : f32 to vector<104x4xf32>
    %92 = arith.subf %91, %90 : vector<104x4xf32>
    %93 = arith.mulf %89, %92 : vector<104x4xf32>
    %cst_37 = arith.constant 1.000000e+00 : f32
    %94 = vector.broadcast %cst_37 : f32 to vector<104x4xf32>
    %95 = arith.subf %94, %81 : vector<104x4xf32>
    %96 = arith.mulf %93, %95 : vector<104x4xf32>
    %97 = arith.addf %81, %96 : vector<104x4xf32>
    %c0_i32_38 = arith.constant 0 : i32
    %98 = vector.broadcast %c0_i32_38 : i32 to vector<104x4xi32>
    %99 = arith.cmpi eq, %54, %98 : vector<104x4xi32>
    %100 = arith.select %99, %81, %97 : vector<104x4xi1>, vector<104x4xf32>
    %c0_39 = arith.constant 0 : index
    %c0_40 = arith.constant 0 : index
    %101 = vector.load %arg10[%c0_39, %c0_40] : memref<104x4xf32, #tpu.memory_space<vmem>>, vector<104x4xf32>
    tpu.vector_store %arg10[%c0_39, %c0_40], %100 {strides = array<i32>} : memref<104x4xf32, #tpu.memory_space<vmem>>, vector<104x4xf32>,
    return
  }
  func.func @transform_0(%arg0: i32) -> (i32, i32) {
    %c0_i32 = arith.constant 0 : i32
    %c0_i32_0 = arith.constant 0 : i32
    return %arg0, %c0_i32 : i32, i32
  }
  func.func @transform_1(%arg0: i32) -> (i32, i32) {
    %c0_i32 = arith.constant 0 : i32
    %c0_i32_0 = arith.constant 0 : i32
    %c0_i32_1 = arith.constant 0 : i32
    return %c0_i32, %c0_i32_0 : i32, i32
  }
  func.func @transform_2(%arg0: i32) -> (i32, i32) {
    %c0_i32 = arith.constant 0 : i32
    %c0_i32_0 = arith.constant 0 : i32
    %c0_i32_1 = arith.constant 0 : i32
    return %c0_i32, %c0_i32_0 : i32, i32
  }
  func.func @transform_3(%arg0: i32) -> (i32, i32) {
    %c0_i32 = arith.constant 0 : i32
    %c0_i32_0 = arith.constant 0 : i32
    %c0_i32_1 = arith.constant 0 : i32
    return %c0_i32, %c0_i32_0 : i32, i32
  }
  func.func @transform_4(%arg0: i32) -> (i32, i32) {
    %c0_i32 = arith.constant 0 : i32
    %c0_i32_0 = arith.constant 0 : i32
    %c0_i32_1 = arith.constant 0 : i32
    return %c0_i32, %c0_i32_0 : i32, i32
  }
  func.func @transform_5(%arg0: i32) -> (i32, i32) {
    %c0_i32 = arith.constant 0 : i32
    %c0_i32_0 = arith.constant 0 : i32
    %c0_i32_1 = arith.constant 0 : i32
    return %c0_i32, %c0_i32_0 : i32, i32
  }
  func.func @transform_6(%arg0: i32) -> (i32, i32) {
    %c0_i32 = arith.constant 0 : i32
    %c0_i32_0 = arith.constant 0 : i32
    %c0_i32_1 = arith.constant 0 : i32
    return %c0_i32, %c0_i32_0 : i32, i32
  }
  func.func @transform_7(%arg0: i32) -> (i32, i32) {
    %c0_i32 = arith.constant 0 : i32
    %c0_i32_0 = arith.constant 0 : i32
    %c0_i32_1 = arith.constant 0 : i32
    return %c0_i32, %c0_i32_0 : i32, i32
  }
  func.func @transform_8(%arg0: i32) -> (i32, i32) {
    %c0_i32 = arith.constant 0 : i32
    %c0_i32_0 = arith.constant 0 : i32
    %c0_i32_1 = arith.constant 0 : i32
    return %c0_i32, %c0_i32_0 : i32, i32
  }
  func.func @transform_9(%arg0: i32) -> (i32, i32) {
    %c0_i32 = arith.constant 0 : i32
    %c0_i32_0 = arith.constant 0 : i32
    return %arg0, %c0_i32 : i32, i32
  }
}

</mosaic_0001>

<llo_original>
// kernel: tpu_custom_call.1
$region0: #{tpu_custom_call.1}
  #allocation0 [shape = 'u32[]', space=smem, size = 0x4, offset = 0x4, fixed_abs, tag = 'smem constant byte address 0x4 - core index']
  #allocation1 [shape = 'u32[144,128]{1,0:T(1,128)}', space=vmem, size = 0x12000, scoped, tag = 'internal scratch']
  %s0 = inlined_call_operand.vmem [shape: f32[208,2], index: 0, kind: input, shape index: {}]
  %s1 = inlined_call_operand.vmem [shape: f32[2,256], index: 1, kind: input, shape index: {}]
  %s2 = inlined_call_operand.vmem [shape: f32[1,256], index: 2, kind: input, shape index: {}]
  %s3 = inlined_call_operand.hbm [shape: bf16[256,512], index: 3, kind: input, shape index: {}]
  %s4 = inlined_call_operand.vmem [shape: f32[1,512], index: 4, kind: input, shape index: {}]
  %s5 = inlined_call_operand.hbm [shape: bf16[512,256], index: 5, kind: input, shape index: {}]
  %s6 = inlined_call_operand.vmem [shape: f32[1,256], index: 6, kind: input, shape index: {}]
  %s7 = inlined_call_operand.vmem [shape: bf16[256,5], index: 7, kind: input, shape index: {}]
  %s8 = inlined_call_operand.vmem [shape: f32[1,5], index: 8, kind: input, shape index: {}]
  %s9 = inlined_call_operand.vmem [shape: f32[208,4], index: 9, kind: output, shape index: {}]
  %s10 = sld [smem:[#allocation0]]
  $region77: #{tpu_custom_call.1} parent=0
    _
  %s12 = ssub.s32 1, %s10
  %s13 = scalar_select 0, %s12, %s10
  $region1: #{tpu_custom_call.1} parent=0
    #allocation2 [shape = 'u8[262144]{0}', space=vmem, size = 0x40000, scoped, tag = 'input window, operand 3, single buffered']
    #allocation3 [shape = 's32[2]{0}', space=sflag, size = 0x8, scoped, tag = 'scoped memory for tpu_custom_call.1']
    #allocation4 [shape = 'u8[262144]{0}', space=vmem, size = 0x40000, scoped, tag = 'input window, operand 5, single buffered']
    #allocation5 [shape = 's32[1]{0}', space=sflag, size = 0x4, scoped, tag = 'scoped memory for tpu_custom_call.1']
    %14 = vsyncpa [#allocation3], 0
    %15 = vsyncpa [#allocation5], 0
    loop: start=0, step=1, limit=4
    $region2: #{tpu_custom_call.1} parent=1 // loop_pre_header
      _
    $region3: #{tpu_custom_call.1} parent=1 // loop_header
      %s17 = sphi 0, %s21
      %p18 = scmp.ge.s32.totalorder %s17, 4
      %s27 = sphi 0, %s29
      %s30 = sphi 0, %s27
      %s31 = sphi 0, %s30
      %s47 = sphi 0, %s31
      %s51 = sphi 0, %s51
      %s53 = sphi 0, %s51
      %s54 = sphi 0, %s53
      %s68 = sphi 0, %s54
      %s72 = sphi 0, %s72
      %s74 = sphi 0, %s72
      %s75 = sphi 0, %s74
      %s89 = sphi 0, %s75
      %s93 = sphi 0, %s93
      %s95 = sphi 0, %s93
      %s96 = sphi 0, %s95
      %s110 = sphi 0, %s96
      %s114 = sphi 0, %s114
      %s116 = sphi 0, %s114
      %s117 = sphi 0, %s116
      %s131 = sphi 0, %s117
      %s135 = sphi 0, %s135
      %s137 = sphi 0, %s135
      %s138 = sphi 0, %s137
      %s152 = sphi 0, %s138
      %s156 = sphi 0, %s156
      %s158 = sphi 0, %s156
      %s159 = sphi 0, %s158
      %s173 = sphi 0, %s159
      %s177 = sphi 0, %s177
      %s179 = sphi 0, %s177
      %s180 = sphi 0, %s179
      %s194 = sphi 0, %s180
      %s198 = sphi 0, %s198
      %s200 = sphi 0, %s198
      %s201 = sphi 0, %s200
      %s215 = sphi 0, %s201
      %s221 = sphi 0, %s223
      %s224 = sphi 0, %s221
      %s225 = sphi 0, %s224
      %s241 = sphi 0, %s225
    $region4: #{tpu_custom_call.1} parent=1 // loop_header_branch
      %20 = sbr.rel (%p18) target = $region8
    $region5: #{tpu_custom_call.1} parent=1 // loop_body
      %s22 = ssub.s32 %s17, 1
      %s23 = ssub.s32 %s17, 2
      %s24 = sadd.s32 %s17, 1
      %s25 = ssub.s32 %s17, %s24
      %p26 = scmp.eq.s32.totalorder %s25, 0
      %s28 = sadd.s32 %s27, 1
      %s29 = scalar_select %p26, %s27, %s28
      %p32 = pneg %p26
      %p33 = scmp.eq.s32.totalorder %s17, 1
      %p34 = por %p32, %p33
      %p35 = scmp.ne.s32.totalorder %s27, %s30
      %p36 = scmp.eq.s32.totalorder %s17, 0
      %p37 = por %p35, %p36
      %p38 = scmp.ne.s32.totalorder %s27, %s30
      %p39 = scmp.eq.s32.totalorder %s22, 1
      %p40 = por %p38, %p39
      %p41 = scmp.ne.s32.totalorder %s30, %s31
      %p42 = scmp.eq.s32.totalorder %s22, 0
      %p43 = por %p41, %p42
      %p44 = scmp.ne.s32.totalorder %s30, %s31
      %p45 = scmp.eq.s32.totalorder %s23, 1
      %p46 = por %p44, %p45
      %p48 = scmp.ne.s32.totalorder %s31, %s47
      %p49 = scmp.eq.s32.totalorder %s23, 0
      %p50 = por %p48, %p49
      %s52 = sadd.s32 %s51, 1
      %p55 = scmp.eq.s32.totalorder %s17, 1
      %p56 = scmp.ne.s32.totalorder %s51, %s53
      %p57 = scmp.eq.s32.totalorder %s17, 0
      %p58 = por %p56, %p57
      %p59 = scmp.ne.s32.totalorder %s51, %s53
      %p60 = scmp.eq.s32.totalorder %s22, 1
      %p61 = por %p59, %p60
      %p62 = scmp.ne.s32.totalorder %s53, %s54
      %p63 = scmp.eq.s32.totalorder %s22, 0
      %p64 = por %p62, %p63
      %p65 = scmp.ne.s32.totalorder %s53, %s54
      %p66 = scmp.eq.s32.totalorder %s23, 1
      %p67 = por %p65, %p66
      %p69 = scmp.ne.s32.totalorder %s54, %s68
      %p70 = scmp.eq.s32.totalorder %s23, 0
      %p71 = por %p69, %p70
      %s73 = sadd.s32 %s72, 1
      %p76 = scmp.eq.s32.totalorder %s17, 1
      %p77 = scmp.ne.s32.totalorder %s72, %s74
      %p78 = scmp.eq.s32.totalorder %s17, 0
      %p79 = por %p77, %p78
      %p80 = scmp.ne.s32.totalorder %s72, %s74
      %p81 = scmp.eq.s32.totalorder %s22, 1
      %p82 = por %p80, %p81
      %p83 = scmp.ne.s32.totalorder %s74, %s75
      %p84 = scmp.eq.s32.totalorder %s22, 0
      %p85 = por %p83, %p84
      %p86 = scmp.ne.s32.totalorder %s74, %s75
      %p87 = scmp.eq.s32.totalorder %s23, 1
      %p88 = por %p86, %p87
      %p90 = scmp.ne.s32.totalorder %s75, %s89
      %p91 = scmp.eq.s32.totalorder %s23, 0
      %p92 = por %p90, %p91
      %s94 = sadd.s32 %s93, 1
      %p97 = scmp.eq.s32.totalorder %s17, 1
      %p98 = scmp.ne.s32.totalorder %s93, %s95
      %p99 = scmp.eq.s32.totalorder %s17, 0
      %p100 = por %p98, %p99
      %p101 = scmp.ne.s32.totalorder %s93, %s95
      %p102 = scmp.eq.s32.totalorder %s22, 1
      %p103 = por %p101, %p102
      %p104 = scmp.ne.s32.totalorder %s95, %s96
      %p105 = scmp.eq.s32.totalorder %s22, 0
      %p106 = por %p104, %p105
      %p107 = scmp.ne.s32.totalorder %s95, %s96
      %p108 = scmp.eq.s32.totalorder %s23, 1
      %p109 = por %p107, %p108
      %p111 = scmp.ne.s32.totalorder %s96, %s110
      %p112 = scmp.eq.s32.totalorder %s23, 0
      %p113 = por %p111, %p112
      %s115 = sadd.s32 %s114, 1
      %p118 = scmp.eq.s32.totalorder %s17, 1
      %p119 = scmp.ne.s32.totalorder %s114, %s116
      %p120 = scmp.eq.s32.totalorder %s17, 0
      %p121 = por %p119, %p120
      %p122 = scmp.ne.s32.totalorder %s114, %s116
      %p123 = scmp.eq.s32.totalorder %s22, 1
      %p124 = por %p122, %p123
      %p125 = scmp.ne.s32.totalorder %s116, %s117
      %p126 = scmp.eq.s32.totalorder %s22, 0
      %p127 = por %p125, %p126
      %p128 = scmp.ne.s32.totalorder %s116, %s117
      %p129 = scmp.eq.s32.totalorder %s23, 1
      %p130 = por %p128, %p129
      %p132 = scmp.ne.s32.totalorder %s117, %s131
      %p133 = scmp.eq.s32.totalorder %s23, 0
      %p134 = por %p132, %p133
      %s136 = sadd.s32 %s135, 1
      %p139 = scmp.eq.s32.totalorder %s17, 1
      %p140 = scmp.ne.s32.totalorder %s135, %s137
      %p141 = scmp.eq.s32.totalorder %s17, 0
      %p142 = por %p140, %p141
      %p143 = scmp.ne.s32.totalorder %s135, %s137
      %p144 = scmp.eq.s32.totalorder %s22, 1
      %p145 = por %p143, %p144
      %p146 = scmp.ne.s32.totalorder %s137, %s138
      %p147 = scmp.eq.s32.totalorder %s22, 0
      %p148 = por %p146, %p147
      %p149 = scmp.ne.s32.totalorder %s137, %s138
      %p150 = scmp.eq.s32.totalorder %s23, 1
      %p151 = por %p149, %p150
      %p153 = scmp.ne.s32.totalorder %s138, %s152
      %p154 = scmp.eq.s32.totalorder %s23, 0
      %p155 = por %p153, %p154
      %s157 = sadd.s32 %s156, 1
      %p160 = scmp.eq.s32.totalorder %s17, 1
      %p161 = scmp.ne.s32.totalorder %s156, %s158
      %p162 = scmp.eq.s32.totalorder %s17, 0
      %p163 = por %p161, %p162
      %p164 = scmp.ne.s32.totalorder %s156, %s158
      %p165 = scmp.eq.s32.totalorder %s22, 1
      %p166 = por %p164, %p165
      %p167 = scmp.ne.s32.totalorder %s158, %s159
      %p168 = scmp.eq.s32.totalorder %s22, 0
      %p169 = por %p167, %p168
      %p170 = scmp.ne.s32.totalorder %s158, %s159
      %p171 = scmp.eq.s32.totalorder %s23, 1
      %p172 = por %p170, %p171
      %p174 = scmp.ne.s32.totalorder %s159, %s173
      %p175 = scmp.eq.s32.totalorder %s23, 0
      %p176 = por %p174, %p175
      %s178 = sadd.s32 %s177, 1
      %p181 = scmp.eq.s32.totalorder %s17, 1
      %p182 = scmp.ne.s32.totalorder %s177, %s179
      %p183 = scmp.eq.s32.totalorder %s17, 0
      %p184 = por %p182, %p183
      %p185 = scmp.ne.s32.totalorder %s177, %s179
      %p186 = scmp.eq.s32.totalorder %s22, 1
      %p187 = por %p185, %p186
      %p188 = scmp.ne.s32.totalorder %s179, %s180
      %p189 = scmp.eq.s32.totalorder %s22, 0
      %p190 = por %p188, %p189
      %p191 = scmp.ne.s32.totalorder %s179, %s180
      %p192 = scmp.eq.s32.totalorder %s23, 1
      %p193 = por %p191, %p192
      %p195 = scmp.ne.s32.totalorder %s180, %s194
      %p196 = scmp.eq.s32.totalorder %s23, 0
      %p197 = por %p195, %p196
      %s199 = sadd.s32 %s198, 1
      %p202 = scmp.eq.s32.totalorder %s17, 1
      %p203 = scmp.ne.s32.totalorder %s198, %s200
      %p204 = scmp.eq.s32.totalorder %s17, 0
      %p205 = por %p203, %p204
      %p206 = scmp.ne.s32.totalorder %s198, %s200
      %p207 = scmp.eq.s32.totalorder %s22, 1
      %p208 = por %p206, %p207
      %p209 = scmp.ne.s32.totalorder %s200, %s201
      %p210 = scmp.eq.s32.totalorder %s22, 0
      %p211 = por %p209, %p210
      %p212 = scmp.ne.s32.totalorder %s200, %s201
      %p213 = scmp.eq.s32.totalorder %s23, 1
      %p214 = por %p212, %p213
      %p216 = scmp.ne.s32.totalorder %s201, %s215
      %p217 = scmp.eq.s32.totalorder %s23, 0
      %p218 = por %p216, %p217
      %s219 = ssub.s32 %s17, %s24
      %p220 = scmp.eq.s32.totalorder %s219, 0
      %s222 = sadd.s32 %s221, 1
      %s223 = scalar_select %p220, %s221, %s222
      %p226 = pneg %p220
      %p227 = scmp.eq.s32.totalorder %s17, 1
      %p228 = por %p226, %p227
      %p229 = scmp.ne.s32.totalorder %s221, %s224
      %p230 = scmp.eq.s32.totalorder %s17, 0
      %p231 = por %p229, %p230
      %p232 = scmp.ne.s32.totalorder %s221, %s224
      %p233 = scmp.eq.s32.totalorder %s22, 1
      %p234 = por %p232, %p233
      %p235 = scmp.ne.s32.totalorder %s224, %s225
      %p236 = scmp.eq.s32.totalorder %s22, 0
      %p237 = por %p235, %p236
      %p238 = scmp.ne.s32.totalorder %s224, %s225
      %p239 = scmp.eq.s32.totalorder %s23, 1
      %p240 = por %p238, %p239
      %p242 = scmp.ne.s32.totalorder %s225, %s241
      %p243 = scmp.eq.s32.totalorder %s23, 0
      %p244 = por %p242, %p243
      %p245 = scmp.le.s32.totalorder 1, %s17
      %p246 = scmp.lt.s32.totalorder %s17, 3
      %p247 = pnand %p245, %p246
      %p248 = pneg %p247
      // Predicated region
      $region9: #{tpu_custom_call.1} parent=5 // pred_check
        _
      $region10: #{tpu_custom_call.1} parent=5 // pred_check_branch
        %250 = sbr.rel (%p247) target = $region12
      $region11: #{tpu_custom_call.1} parent=5 // pred_region
        %s251 = ssub.s32 %s17, 1
        // Predicated region
        $region13: #{tpu_custom_call.1} parent=11 // pred_check
          %p252 = pneg %p64
        $region14: #{tpu_custom_call.1} parent=11 // pred_check_branch
          %254 = sbr.rel (%p252) target = $region16
        $region15: #{tpu_custom_call.1} parent=11 // pred_region
          _
        $region16: #{tpu_custom_call.1} parent=11 // pred_fallthru
          _
        // Predicated region
        $region17: #{tpu_custom_call.1} parent=11 // pred_check
          %p255 = pneg %p85
        $region18: #{tpu_custom_call.1} parent=11 // pred_check_branch
          %257 = sbr.rel (%p255) target = $region20
        $region19: #{tpu_custom_call.1} parent=11 // pred_region
          _
        $region20: #{tpu_custom_call.1} parent=11 // pred_fallthru
          _
        // Predicated region
        $region21: #{tpu_custom_call.1} parent=11 // pred_check
          %p258 = pneg %p106
        $region22: #{tpu_custom_call.1} parent=11 // pred_check_branch
          %260 = sbr.rel (%p258) target = $region24
        $region23: #{tpu_custom_call.1} parent=11 // pred_region
          %s262 = ssub.s32 8192, 8192
          %263 = vsyncadd [#allocation3], %s262
          %s264 = sshll.u32 [#allocation2], 4
          %s265 = int_to_ptr.vmem [resolvable:$true] %s264
          %270 = dma.hbm_to_vmem [thread:$0]  %s3, 8192, %s265, [#allocation3], 256, 256, 16
        $region24: #{tpu_custom_call.1} parent=11 // pred_fallthru
          _
        // Predicated region
        $region25: #{tpu_custom_call.1} parent=11 // pred_check
          %p271 = pneg %p127
        $region26: #{tpu_custom_call.1} parent=11 // pred_check_branch
          %273 = sbr.rel (%p271) target = $region28
        $region27: #{tpu_custom_call.1} parent=11 // pred_region
          _
        $region28: #{tpu_custom_call.1} parent=11 // pred_fallthru
          _
        // Predicated region
        $region29: #{tpu_custom_call.1} parent=11 // pred_check
          %p274 = pneg %p148
        $region30: #{tpu_custom_call.1} parent=11 // pred_check_branch
          %276 = sbr.rel (%p274) target = $region32
        $region31: #{tpu_custom_call.1} parent=11 // pred_region
          %s278 = ssub.s32 8192, 8192
          %279 = vsyncadd [#allocation5], %s278
          %s280 = sshll.u32 [#allocation4], 4
          %s281 = int_to_ptr.vmem [resolvable:$true] %s280
          %286 = dma.hbm_to_vmem [thread:$0]  %s5, 8192, %s281, [#allocation5], 128, 128, 8
        $region32: #{tpu_custom_call.1} parent=11 // pred_fallthru
          _
        // Predicated region
        $region33: #{tpu_custom_call.1} parent=11 // pred_check
          %p287 = pneg %p169
        $region34: #{tpu_custom_call.1} parent=11 // pred_check_branch
          %289 = sbr.rel (%p287) target = $region36
        $region35: #{tpu_custom_call.1} parent=11 // pred_region
          _
        $region36: #{tpu_custom_call.1} parent=11 // pred_fallthru
          _
        // Predicated region
        $region37: #{tpu_custom_call.1} parent=11 // pred_check
          %p290 = pneg %p190
        $region38: #{tpu_custom_call.1} parent=11 // pred_check_branch
          %292 = sbr.rel (%p290) target = $region40
        $region39: #{tpu_custom_call.1} parent=11 // pred_region
          _
        $region40: #{tpu_custom_call.1} parent=11 // pred_fallthru
          _
        // Predicated region
        $region41: #{tpu_custom_call.1} parent=11 // pred_check
          %p293 = pneg %p211
        $region42: #{tpu_custom_call.1} parent=11 // pred_check_branch
          %295 = sbr.rel (%p293) target = $region44
        $region43: #{tpu_custom_call.1} parent=11 // pred_region
          _
        $region44: #{tpu_custom_call.1} parent=11 // pred_fallthru
          _
      $region12: #{tpu_custom_call.1} parent=5 // pred_fallthru
        _
      %p296 = scmp.lt.s32.totalorder %s17, 2
      // Predicated region
      $region45: #{tpu_custom_call.1} parent=5 // pred_check
        %p297 = pneg %p296
      $region46: #{tpu_custom_call.1} parent=5 // pred_check_branch
        %299 = sbr.rel (%p297) target = $region48
      $region47: #{tpu_custom_call.1} parent=5 // pred_region
        // Predicated region
        $region49: #{tpu_custom_call.1} parent=47 // pred_check
          %p300 = pneg %p37
        $region50: #{tpu_custom_call.1} parent=47 // pred_check_branch
          %302 = sbr.rel (%p300) target = $region52
        $region51: #{tpu_custom_call.1} parent=47 // pred_region
          %s303 = smul.u32 13, %s17
          %p304 = scmp.lt.s32.totalorder %s303, 25
          %s305 = scalar_select %p304, %s303, 25
          %s306 = smul.addr %s305, 8
          %s307 = scalar_lea.vmem %s0, %s306
          %s308 = smul.u32 13, %s17
        $region52: #{tpu_custom_call.1} parent=47 // pred_fallthru
          _
      $region48: #{tpu_custom_call.1} parent=5 // pred_fallthru
        _
      %p309 = scmp.le.s32.totalorder 1, %s17
      %p310 = scmp.lt.s32.totalorder %s17, 3
      %p311 = pnand %p309, %p310
      %p312 = pneg %p311
      // Predicated region
      $region53: #{tpu_custom_call.1} parent=5 // pred_check
        _
      $region54: #{tpu_custom_call.1} parent=5 // pred_check_branch
        %314 = sbr.rel (%p311) target = $region56
      $region55: #{tpu_custom_call.1} parent=5 // pred_region
        %s315 = ssub.s32 %s17, 1
        // Predicated region
        $region57: #{tpu_custom_call.1} parent=55 // pred_check
          %p316 = pneg %p106
        $region58: #{tpu_custom_call.1} parent=55 // pred_check_branch
          %318 = sbr.rel (%p316) target = $region60
        $region59: #{tpu_custom_call.1} parent=55 // pred_region
          %319 = dma.done [#allocation3], 8192
        $region60: #{tpu_custom_call.1} parent=55 // pred_fallthru
          _
        // Predicated region
        $region61: #{tpu_custom_call.1} parent=55 // pred_check
          %p320 = pneg %p148
        $region62: #{tpu_custom_call.1} parent=55 // pred_check_branch
          %322 = sbr.rel (%p320) target = $region64
        $region63: #{tpu_custom_call.1} parent=55 // pred_region
          %323 = dma.done [#allocation5], 8192
        $region64: #{tpu_custom_call.1} parent=55 // pred_fallthru
          _
        %s324 = smul.u32 13, %s22
        %p325 = scmp.lt.s32.totalorder %s324, 25
        %s326 = scalar_select %p325, %s324, 25
        %s327 = smul.addr %s326, 8
        %s328 = scalar_lea.vmem %s0, %s327
        %p329 = pneg %p43
        %p330 = pneg %p40
        %p331 = pneg %p64
        %p332 = pneg %p61
        %p333 = pneg %p85
        %p334 = pneg %p82
        %p335 = pneg %p106
        %p336 = pneg %p103
        %p337 = pneg %p127
        %p338 = pneg %p124
        %p339 = pneg %p148
        %p340 = pneg %p145
        %p341 = pneg %p169
        %p342 = pneg %p166
        %p343 = pneg %p190
        %p344 = pneg %p187
        %p345 = pneg %p211
        %p346 = pneg %p208
        %p347 = pneg %p237
        %p348 = pneg %p234
        %s349 = smul.u32 13, %s22
        %p350 = scmp.lt.s32.totalorder %s349, 25
        %s351 = scalar_select %p350, %s349, 25
        %s352 = smul.addr %s351, 8
        %s353 = scalar_lea.vmem %s9, %s352
        %s354 = smul.u32 13, %s22
        %p355 = scmp.lt.s32.totalorder %s354, 25
        %s356 = scalar_select %p355, %s354, 25
        %s357 = smul.addr %s356, 8
        %s358 = scalar_lea.vmem %s0, %s357
        %s359 = smul.u32 13, %s22
        %s360 = smul.u32 13, %s22
        %p361 = scmp.lt.s32.totalorder %s360, 25
        %s362 = scalar_select %p361, %s360, 25
        %s363 = smul.addr %s362, 8
        %s364 = scalar_lea.vmem %s9, %s363
        %s365 = smul.u32 13, %s22
        %v367 = vld [vmem:[%s2] sm:$0x3]
        %v369 = vlaneseq
        %v370 = vshrl.u32 %v369, 7
        %v371 = vsub.s32 0, %v370
        %v372 = vrot.slane %v367, %v371
        %v373 = vlaneseq
        %v374 = vshrl.u32 %v373, 7
        %v375 = vsub.s32 1, %v374
        %v376 = vrot.slane %v367, %v375
        %v379 = vld [vmem:[%s358] sm:$0xff]
        %v380 = vld [vmem:[%s358 + $0x8] sm:$0xff]
        %v381 = vld [vmem:[%s358 + $0x10] sm:$0xff]
        %v382 = vld [vmem:[%s358 + $0x18] sm:$0xff]
        %v383 = vld [vmem:[%s358 + $0x20] sm:$0xff]
        %v384 = vld [vmem:[%s358 + $0x28] sm:$0xff]
        %v385 = vld [vmem:[%s358 + $0x30] sm:$0xff]
        %v386 = vld [vmem:[%s358 + $0x38] sm:$0xff]
        %v387 = vld [vmem:[%s358 + $0x40] sm:$0xff]
        %v388 = vld [vmem:[%s358 + $0x48] sm:$0xff]
        %v389 = vld [vmem:[%s358 + $0x50] sm:$0xff]
        %v390 = vld [vmem:[%s358 + $0x58] sm:$0xff]
        %v391 = vld [vmem:[%s358 + $0x60] sm:$0xff]
        %v392 = vld [vmem:[%s1] ss:$2 sm:$0x3]
        %394 = vset.pattern.permute.xlu0 0
        %395 = vperm.xlu0 %394, %v379
        %v396 = vpop.permute.xlu0 %395
        %399 = vset.pattern.permute.xlu0 0
        %400 = vperm.xlu0 %399, %v380
        %v401 = vpop.permute.xlu0 %400
        %404 = vset.pattern.permute.xlu0 0
        %405 = vperm.xlu0 %404, %v381
        %v406 = vpop.permute.xlu0 %405
        %409 = vset.pattern.permute.xlu0 0
        %410 = vperm.xlu0 %409, %v382
        %v411 = vpop.permute.xlu0 %410
        %414 = vset.pattern.permute.xlu0 0
        %415 = vperm.xlu0 %414, %v383
        %v416 = vpop.permute.xlu0 %415
        %419 = vset.pattern.permute.xlu0 0
        %420 = vperm.xlu0 %419, %v384
        %v421 = vpop.permute.xlu0 %420
        %424 = vset.pattern.permute.xlu0 0
        %425 = vperm.xlu0 %424, %v385
        %v426 = vpop.permute.xlu0 %425
        %429 = vset.pattern.permute.xlu0 0
        %430 = vperm.xlu0 %429, %v386
        %v431 = vpop.permute.xlu0 %430
        %434 = vset.pattern.permute.xlu0 0
        %435 = vperm.xlu0 %434, %v387
        %v436 = vpop.permute.xlu0 %435
        %439 = vset.pattern.permute.xlu0 0
        %440 = vperm.xlu0 %439, %v388
        %v441 = vpop.permute.xlu0 %440
        %444 = vset.pattern.permute.xlu0 0
        %445 = vperm.xlu0 %444, %v389
        %v446 = vpop.permute.xlu0 %445
        %449 = vset.pattern.permute.xlu0 0
        %450 = vperm.xlu0 %449, %v390
        %v451 = vpop.permute.xlu0 %450
        %454 = vset.pattern.permute.xlu0 0
        %455 = vperm.xlu0 %454, %v391
        %v456 = vpop.permute.xlu0 %455
        %v459 = vlaneseq
        %v460 = vshrl.u32 %v459, 7
        %v461 = vsub.s32 0, %v460
        %v462 = vrot.slane %v392, %v461
        %v463 = vlaneseq
        %v464 = vshrl.u32 %v463, 7
        %v465 = vsub.s32 1, %v464
        %v466 = vrot.slane %v392, %v465
        %v469 = vmul.f32 %v396, %v462
        %v470 = vmul.f32 %v396, %v466
        %v471 = vmul.f32 %v401, %v462
        %v472 = vmul.f32 %v401, %v466
        %v473 = vmul.f32 %v406, %v462
        %v474 = vmul.f32 %v406, %v466
        %v475 = vmul.f32 %v411, %v462
        %v476 = vmul.f32 %v411, %v466
        %v477 = vmul.f32 %v416, %v462
        %v478 = vmul.f32 %v416, %v466
        %v479 = vmul.f32 %v421, %v462
        %v480 = vmul.f32 %v421, %v466
        %v481 = vmul.f32 %v426, %v462
        %v482 = vmul.f32 %v426, %v466
        %v483 = vmul.f32 %v431, %v462
        %v484 = vmul.f32 %v431, %v466
        %v485 = vmul.f32 %v436, %v462
        %v486 = vmul.f32 %v436, %v466
        %v487 = vmul.f32 %v441, %v462
        %v488 = vmul.f32 %v441, %v466
        %v489 = vmul.f32 %v446, %v462
        %v490 = vmul.f32 %v446, %v466
        %v491 = vmul.f32 %v451, %v462
        %v492 = vmul.f32 %v451, %v466
        %v493 = vmul.f32 %v456, %v462
        %v494 = vmul.f32 %v456, %v466
        %v495 = vadd.f32 %v372, %v469
        %v496 = vadd.f32 %v376, %v470
        %v497 = vadd.f32 %v372, %v471
        %v498 = vadd.f32 %v376, %v472
        %v499 = vadd.f32 %v372, %v473
        %v500 = vadd.f32 %v376, %v474
        %v501 = vadd.f32 %v372, %v475
        %v502 = vadd.f32 %v376, %v476
        %v503 = vadd.f32 %v372, %v477
        %v504 = vadd.f32 %v376, %v478
        %v505 = vadd.f32 %v372, %v479
        %v506 = vadd.f32 %v376, %v480
        %v507 = vadd.f32 %v372, %v481
        %v508 = vadd.f32 %v376, %v482
        %v509 = vadd.f32 %v372, %v483
        %v510 = vadd.f32 %v376, %v484
        %v511 = vadd.f32 %v372, %v485
        %v512 = vadd.f32 %v376, %v486
        %v513 = vadd.f32 %v372, %v487
        %v514 = vadd.f32 %v376, %v488
        %v515 = vadd.f32 %v372, %v489
        %v516 = vadd.f32 %v376, %v490
        %v517 = vadd.f32 %v372, %v491
        %v518 = vadd.f32 %v376, %v492
        %v519 = vadd.f32 %v372, %v493
        %v520 = vadd.f32 %v376, %v494
        %s521 = scalar_lea.vmem %s1, 1
        %v522 = vld [vmem:[%s521] ss:$2 sm:$0x3]
        %523 = vset.pattern.permute.xlu0 1
        %524 = vperm.xlu0 %523, %v379
        %v525 = vpop.permute.xlu0 %524
        %527 = vset.pattern.permute.xlu0 1
        %528 = vperm.xlu0 %527, %v380
        %v529 = vpop.permute.xlu0 %528
        %531 = vset.pattern.permute.xlu0 1
        %532 = vperm.xlu0 %531, %v381
        %v533 = vpop.permute.xlu0 %532
        %535 = vset.pattern.permute.xlu0 1
        %536 = vperm.xlu0 %535, %v382
        %v537 = vpop.permute.xlu0 %536
        %539 = vset.pattern.permute.xlu0 1
        %540 = vperm.xlu0 %539, %v383
        %v541 = vpop.permute.xlu0 %540
        %543 = vset.pattern.permute.xlu0 1
        %544 = vperm.xlu0 %543, %v384
        %v545 = vpop.permute.xlu0 %544
        %547 = vset.pattern.permute.xlu0 1
        %548 = vperm.xlu0 %547, %v385
        %v549 = vpop.permute.xlu0 %548
        %551 = vset.pattern.permute.xlu0 1
        %552 = vperm.xlu0 %551, %v386
        %v553 = vpop.permute.xlu0 %552
        %555 = vset.pattern.permute.xlu0 1
        %556 = vperm.xlu0 %555, %v387
        %v557 = vpop.permute.xlu0 %556
        %559 = vset.pattern.permute.xlu0 1
        %560 = vperm.xlu0 %559, %v388
        %v561 = vpop.permute.xlu0 %560
        %563 = vset.pattern.permute.xlu0 1
        %564 = vperm.xlu0 %563, %v389
        %v565 = vpop.permute.xlu0 %564
        %567 = vset.pattern.permute.xlu0 1
        %568 = vperm.xlu0 %567, %v390
        %v569 = vpop.permute.xlu0 %568
        %571 = vset.pattern.permute.xlu0 1
        %572 = vperm.xlu0 %571, %v391
        %v573 = vpop.permute.xlu0 %572
        %v576 = vlaneseq
        %v577 = vshrl.u32 %v576, 7
        %v578 = vsub.s32 0, %v577
        %v579 = vrot.slane %v522, %v578
        %v580 = vlaneseq
        %v581 = vshrl.u32 %v580, 7
        %v582 = vsub.s32 1, %v581
        %v583 = vrot.slane %v522, %v582
        %v586 = vmul.f32 %v525, %v579
        %v587 = vmul.f32 %v525, %v583
        %v588 = vmul.f32 %v529, %v579
        %v589 = vmul.f32 %v529, %v583
        %v590 = vmul.f32 %v533, %v579
        %v591 = vmul.f32 %v533, %v583
        %v592 = vmul.f32 %v537, %v579
        %v593 = vmul.f32 %v537, %v583
        %v594 = vmul.f32 %v541, %v579
        %v595 = vmul.f32 %v541, %v583
        %v596 = vmul.f32 %v545, %v579
        %v597 = vmul.f32 %v545, %v583
        %v598 = vmul.f32 %v549, %v579
        %v599 = vmul.f32 %v549, %v583
        %v600 = vmul.f32 %v553, %v579
        %v601 = vmul.f32 %v553, %v583
        %v602 = vmul.f32 %v557, %v579
        %v603 = vmul.f32 %v557, %v583
        %v604 = vmul.f32 %v561, %v579
        %v605 = vmul.f32 %v561, %v583
        %v606 = vmul.f32 %v565, %v579
        %v607 = vmul.f32 %v565, %v583
        %v608 = vmul.f32 %v569, %v579
        %v609 = vmul.f32 %v569, %v583
        %v610 = vmul.f32 %v573, %v579
        %v611 = vmul.f32 %v573, %v583
        %v612 = vadd.f32 %v495, %v586
        %v613 = vadd.f32 %v496, %v587
        %v614 = vadd.f32 %v497, %v588
        %v615 = vadd.f32 %v498, %v589
        %v616 = vadd.f32 %v499, %v590
        %v617 = vadd.f32 %v500, %v591
        %v618 = vadd.f32 %v501, %v592
        %v619 = vadd.f32 %v502, %v593
        %v620 = vadd.f32 %v503, %v594
        %v621 = vadd.f32 %v504, %v595
        %v622 = vadd.f32 %v505, %v596
        %v623 = vadd.f32 %v506, %v597
        %v624 = vadd.f32 %v507, %v598
        %v625 = vadd.f32 %v508, %v599
        %v626 = vadd.f32 %v509, %v600
        %v627 = vadd.f32 %v510, %v601
        %v628 = vadd.f32 %v511, %v602
        %v629 = vadd.f32 %v512, %v603
        %v630 = vadd.f32 %v513, %v604
        %v631 = vadd.f32 %v514, %v605
        %v632 = vadd.f32 %v515, %v606
        %v633 = vadd.f32 %v516, %v607
        %v634 = vadd.f32 %v517, %v608
        %v635 = vadd.f32 %v518, %v609
        %v636 = vadd.f32 %v519, %v610
        %v637 = vadd.f32 %v520, %v611
        %v638 = vmax.f32 %v612, 0.0
        %v639 = vmax.f32 %v613, 0.0
        %v640 = vmax.f32 %v614, 0.0
        %v641 = vmax.f32 %v615, 0.0
        %v642 = vmax.f32 %v616, 0.0
        %v643 = vmax.f32 %v617, 0.0
        %v644 = vmax.f32 %v618, 0.0
        %v645 = vmax.f32 %v619, 0.0
        %v646 = vmax.f32 %v620, 0.0
        %v647 = vmax.f32 %v621, 0.0
        %v648 = vmax.f32 %v622, 0.0
        %v649 = vmax.f32 %v623, 0.0
        %v650 = vmax.f32 %v624, 0.0
        %v651 = vmax.f32 %v625, 0.0
        %v652 = vmax.f32 %v626, 0.0
        %v653 = vmax.f32 %v627, 0.0
        %v654 = vmax.f32 %v628, 0.0
        %v655 = vmax.f32 %v629, 0.0
        %v656 = vmax.f32 %v630, 0.0
        %v657 = vmax.f32 %v631, 0.0
        %v658 = vmax.f32 %v632, 0.0
        %v659 = vmax.f32 %v633, 0.0
        %v660 = vmax.f32 %v634, 0.0
        %v661 = vmax.f32 %v635, 0.0
        %v662 = vmax.f32 %v636, 0.0
        %v663 = vmax.f32 %v637, 0.0
        %v664 = vpack.c.bf16 %v640, %v638
        %v665 = vpack.c.bf16 %v641, %v639
        %v666 = vpack.c.bf16 %v644, %v642
        %v667 = vpack.c.bf16 %v645, %v643
        %v668 = vpack.c.bf16 %v648, %v646
        %v669 = vpack.c.bf16 %v649, %v647
        %v670 = vpack.c.bf16 %v652, %v650
        %v671 = vpack.c.bf16 %v653, %v651
        %v672 = vpack.c.bf16 %v656, %v654
        %v673 = vpack.c.bf16 %v657, %v655
        %v674 = vpack.c.bf16 %v660, %v658
        %v675 = vpack.c.bf16 %v661, %v659
        %v676 = vpack.c.bf16 %v662, %v662
        %v677 = vpack.c.bf16 %v663, %v663
        %v678 = vld [vmem:[#allocation2] sm:$0xff]
        %v679 = vld [vmem:[#allocation2 + $0x8] sm:$0xff]
        %v680 = vld [vmem:[#allocation2 + $0x10] sm:$0xff]
        %v681 = vld [vmem:[#allocation2 + $0x18] sm:$0xff]
        %v682 = vld [vmem:[#allocation2 + $0x20] sm:$0xff]
        %v683 = vld [vmem:[#allocation2 + $0x28] sm:$0xff]
        %v684 = vld [vmem:[#allocation2 + $0x30] sm:$0xff]
        %v685 = vld [vmem:[#allocation2 + $0x38] sm:$0xff]
        %v686 = vld [vmem:[#allocation2 + $0x40] sm:$0xff]
        %v687 = vld [vmem:[#allocation2 + $0x48] sm:$0xff]
        %v688 = vld [vmem:[#allocation2 + $0x50] sm:$0xff]
        %v689 = vld [vmem:[#allocation2 + $0x58] sm:$0xff]
        %v690 = vld [vmem:[#allocation2 + $0x60] sm:$0xff]
        %v691 = vld [vmem:[#allocation2 + $0x68] sm:$0xff]
        %v692 = vld [vmem:[#allocation2 + $0x70] sm:$0xff]
        %v693 = vld [vmem:[#allocation2 + $0x78] sm:$0xff]
        %v694 = vld [vmem:[#allocation2 + $0x80] sm:$0xff]
        %v695 = vld [vmem:[#allocation2 + $0x88] sm:$0xff]
        %v696 = vld [vmem:[#allocation2 + $0x90] sm:$0xff]
        %v697 = vld [vmem:[#allocation2 + $0x98] sm:$0xff]
        %v698 = vld [vmem:[#allocation2 + $0xa0] sm:$0xff]
        %v699 = vld [vmem:[#allocation2 + $0xa8] sm:$0xff]
        %v700 = vld [vmem:[#allocation2 + $0xb0] sm:$0xff]
        %v701 = vld [vmem:[#allocation2 + $0xb8] sm:$0xff]
        %v702 = vld [vmem:[#allocation2 + $0xc0] sm:$0xff]
        %v703 = vld [vmem:[#allocation2 + $0xc8] sm:$0xff]
        %v704 = vld [vmem:[#allocation2 + $0xd0] sm:$0xff]
        %v705 = vld [vmem:[#allocation2 + $0xd8] sm:$0xff]
        %v706 = vld [vmem:[#allocation2 + $0xe0] sm:$0xff]
        %v707 = vld [vmem:[#allocation2 + $0xe8] sm:$0xff]
        %v708 = vld [vmem:[#allocation2 + $0xf0] sm:$0xff]
        %v709 = vld [vmem:[#allocation2 + $0xf8] sm:$0xff]
        %v710 = vld [vmem:[#allocation2 + $0x100] sm:$0xff]
        %v711 = vld [vmem:[#allocation2 + $0x108] sm:$0xff]
        %v712 = vld [vmem:[#allocation2 + $0x110] sm:$0xff]
        %v713 = vld [vmem:[#allocation2 + $0x118] sm:$0xff]
        %v714 = vld [vmem:[#allocation2 + $0x120] sm:$0xff]
        %v715 = vld [vmem:[#allocation2 + $0x128] sm:$0xff]
        %v716 = vld [vmem:[#allocation2 + $0x130] sm:$0xff]
        %v717 = vld [vmem:[#allocation2 + $0x138] sm:$0xff]
        %v718 = vld [vmem:[#allocation2 + $0x140] sm:$0xff]
        %v719 = vld [vmem:[#allocation2 + $0x148] sm:$0xff]
        %v720 = vld [vmem:[#allocation2 + $0x150] sm:$0xff]
        %v721 = vld [vmem:[#allocation2 + $0x158] sm:$0xff]
        %v722 = vld [vmem:[#allocation2 + $0x160] sm:$0xff]
        %v723 = vld [vmem:[#allocation2 + $0x168] sm:$0xff]
        %v724 = vld [vmem:[#allocation2 + $0x170] sm:$0xff]
        %v725 = vld [vmem:[#allocation2 + $0x178] sm:$0xff]
        %v726 = vld [vmem:[#allocation2 + $0x180] sm:$0xff]
        %v727 = vld [vmem:[#allocation2 + $0x188] sm:$0xff]
        %v728 = vld [vmem:[#allocation2 + $0x190] sm:$0xff]
        %v729 = vld [vmem:[#allocation2 + $0x198] sm:$0xff]
        %v730 = vld [vmem:[#allocation2 + $0x1a0] sm:$0xff]
        %v731 = vld [vmem:[#allocation2 + $0x1a8] sm:$0xff]
        %v732 = vld [vmem:[#allocation2 + $0x1b0] sm:$0xff]
        %v733 = vld [vmem:[#allocation2 + $0x1b8] sm:$0xff]
        %v734 = vld [vmem:[#allocation2 + $0x1c0] sm:$0xff]
        %v735 = vld [vmem:[#allocation2 + $0x1c8] sm:$0xff]
        %v736 = vld [vmem:[#allocation2 + $0x1d0] sm:$0xff]
        %v737 = vld [vmem:[#allocation2 + $0x1d8] sm:$0xff]
        %v738 = vld [vmem:[#allocation2 + $0x1e0] sm:$0xff]
        %v739 = vld [vmem:[#allocation2 + $0x1e8] sm:$0xff]
        %v740 = vld [vmem:[#allocation2 + $0x1f0] sm:$0xff]
        %v741 = vld [vmem:[#allocation2 + $0x1f8] sm:$0xff]
        %v742 = vld [vmem:[%s4] sm:$0xf]
        %v744 = vlaneseq
        %v745 = vshrl.u32 %v744, 7
        %v746 = vsub.s32 0, %v745
        %v747 = vrot.slane %v742, %v746
        %v748 = vlaneseq
        %v749 = vshrl.u32 %v748, 7
        %v750 = vsub.s32 1, %v749
        %v751 = vrot.slane %v742, %v750
        %v752 = vlaneseq
        %v753 = vshrl.u32 %v752, 7
        %v754 = vsub.s32 2, %v753
        %v755 = vrot.slane %v742, %v754
        %v756 = vlaneseq
        %v757 = vshrl.u32 %v756, 7
        %v758 = vsub.s32 3, %v757
        %v759 = vrot.slane %v742, %v758
        %v828 = vunpack.c.l.b16 %v678
        %v829 = vunpack.c.h.b16 %v678
        %v830 = vunpack.c.l.b16 %v679
        %v831 = vunpack.c.h.b16 %v679
        %v832 = vunpack.c.l.b16 %v680
        %v833 = vunpack.c.h.b16 %v680
        %v834 = vunpack.c.l.b16 %v681
        %v835 = vunpack.c.h.b16 %v681
        %v836 = vunpack.c.l.b16 %v682
        %v837 = vunpack.c.h.b16 %v682
        %v838 = vunpack.c.l.b16 %v683
        %v839 = vunpack.c.h.b16 %v683
        %v840 = vunpack.c.l.b16 %v684
        %v841 = vunpack.c.h.b16 %v684
        %v842 = vunpack.c.l.b16 %v685
        %v843 = vunpack.c.h.b16 %v685
        %v844 = vunpack.c.l.b16 %v686
        %v845 = vunpack.c.h.b16 %v686
        %v846 = vunpack.c.l.b16 %v687
        %v847 = vunpack.c.h.b16 %v687
        %v848 = vunpack.c.l.b16 %v688
        %v849 = vunpack.c.h.b16 %v688
        %v850 = vunpack.c.l.b16 %v689
        %v851 = vunpack.c.h.b16 %v689
        %v852 = vunpack.c.l.b16 %v690
        %v853 = vunpack.c.h.b16 %v690
        %v854 = vunpack.c.l.b16 %v691
        %v855 = vunpack.c.h.b16 %v691
        %v856 = vunpack.c.l.b16 %v692
        %v857 = vunpack.c.h.b16 %v692
        %v858 = vunpack.c.l.b16 %v693
        %v859 = vunpack.c.h.b16 %v693
        %v860 = vunpack.c.l.b16 %v694
        %v861 = vunpack.c.h.b16 %v694
        %v862 = vunpack.c.l.b16 %v695
        %v863 = vunpack.c.h.b16 %v695
        %v864 = vunpack.c.l.b16 %v696
        %v865 = vunpack.c.h.b16 %v696
        %v866 = vunpack.c.l.b16 %v697
        %v867 = vunpack.c.h.b16 %v697
        %v868 = vunpack.c.l.b16 %v698
        %v869 = vunpack.c.h.b16 %v698
        %v870 = vunpack.c.l.b16 %v699
        %v871 = vunpack.c.h.b16 %v699
        %v872 = vunpack.c.l.b16 %v700
        %v873 = vunpack.c.h.b16 %v700
        %v874 = vunpack.c.l.b16 %v701
        %v875 = vunpack.c.h.b16 %v701
        %v876 = vunpack.c.l.b16 %v702
        %v877 = vunpack.c.h.b16 %v702
        %v878 = vunpack.c.l.b16 %v703
        %v879 = vunpack.c.h.b16 %v703
        %v880 = vunpack.c.l.b16 %v704
        %v881 = vunpack.c.h.b16 %v704
        %v882 = vunpack.c.l.b16 %v705
        %v883 = vunpack.c.h.b16 %v705
        %v884 = vunpack.c.l.b16 %v706
        %v885 = vunpack.c.h.b16 %v706
        %v886 = vunpack.c.l.b16 %v707
        %v887 = vunpack.c.h.b16 %v707
        %v888 = vunpack.c.l.b16 %v708
        %v889 = vunpack.c.h.b16 %v708
        %v890 = vunpack.c.l.b16 %v709
        %v891 = vunpack.c.h.b16 %v709
        %v892 = vunpack.c.l.b16 %v710
        %v893 = vunpack.c.h.b16 %v710
        %v894 = vunpack.c.l.b16 %v711
        %v895 = vunpack.c.h.b16 %v711
        %v896 = vunpack.c.l.b16 %v712
        %v897 = vunpack.c.h.b16 %v712
        %v898 = vunpack.c.l.b16 %v713
        %v899 = vunpack.c.h.b16 %v713
        %v900 = vunpack.c.l.b16 %v714
        %v901 = vunpack.c.h.b16 %v714
        %v902 = vunpack.c.l.b16 %v715
        %v903 = vunpack.c.h.b16 %v715
        %v904 = vunpack.c.l.b16 %v716
        %v905 = vunpack.c.h.b16 %v716
        %v906 = vunpack.c.l.b16 %v717
        %v907 = vunpack.c.h.b16 %v717
        %v908 = vunpack.c.l.b16 %v718
        %v909 = vunpack.c.h.b16 %v718
        %v910 = vunpack.c.l.b16 %v719
        %v911 = vunpack.c.h.b16 %v719
        %v912 = vunpack.c.l.b16 %v720
        %v913 = vunpack.c.h.b16 %v720
        %v914 = vunpack.c.l.b16 %v721
        %v915 = vunpack.c.h.b16 %v721
        %v916 = vunpack.c.l.b16 %v722
        %v917 = vunpack.c.h.b16 %v722
        %v918 = vunpack.c.l.b16 %v723
        %v919 = vunpack.c.h.b16 %v723
        %v920 = vunpack.c.l.b16 %v724
        %v921 = vunpack.c.h.b16 %v724
        %v922 = vunpack.c.l.b16 %v725
        %v923 = vunpack.c.h.b16 %v725
        %v924 = vunpack.c.l.b16 %v726
        %v925 = vunpack.c.h.b16 %v726
        %v926 = vunpack.c.l.b16 %v727
        %v927 = vunpack.c.h.b16 %v727
        %v928 = vunpack.c.l.b16 %v728
        %v929 = vunpack.c.h.b16 %v728
        %v930 = vunpack.c.l.b16 %v729
        %v931 = vunpack.c.h.b16 %v729
        %v932 = vunpack.c.l.b16 %v730
        %v933 = vunpack.c.h.b16 %v730
        %v934 = vunpack.c.l.b16 %v731
        %v935 = vunpack.c.h.b16 %v731
        %v936 = vunpack.c.l.b16 %v732
        %v937 = vunpack.c.h.b16 %v732
        %v938 = vunpack.c.l.b16 %v733
        %v939 = vunpack.c.h.b16 %v733
        %v940 = vunpack.c.l.b16 %v734
        %v941 = vunpack.c.h.b16 %v734
        %v942 = vunpack.c.l.b16 %v735
        %v943 = vunpack.c.h.b16 %v735
        %v944 = vunpack.c.l.b16 %v736
        %v945 = vunpack.c.h.b16 %v736
        %v946 = vunpack.c.l.b16 %v737
        %v947 = vunpack.c.h.b16 %v737
        %v948 = vunpack.c.l.b16 %v738
        %v949 = vunpack.c.h.b16 %v738
        %v950 = vunpack.c.l.b16 %v739
        %v951 = vunpack.c.h.b16 %v739
        %v952 = vunpack.c.l.b16 %v740
        %v953 = vunpack.c.h.b16 %v740
        %v954 = vunpack.c.l.b16 %v741
        %v955 = vunpack.c.h.b16 %v741
        %v956 = vpack.c.b16 %v832, %v828
        %v957 = vpack.c.b16 %v833, %v829
        %v958 = vpack.c.b16 %v834, %v830
        %v959 = vpack.c.b16 %v835, %v831
        %v960 = vpack.c.b16 %v840, %v836
        %v961 = vpack.c.b16 %v841, %v837
        %v962 = vpack.c.b16 %v842, %v838
        %v963 = vpack.c.b16 %v843, %v839
        %v964 = vpack.c.b16 %v848, %v844
        %v965 = vpack.c.b16 %v849, %v845
        %v966 = vpack.c.b16 %v850, %v846
        %v967 = vpack.c.b16 %v851, %v847
        %v968 = vpack.c.b16 %v856, %v852
        %v969 = vpack.c.b16 %v857, %v853
        %v970 = vpack.c.b16 %v858, %v854
        %v971 = vpack.c.b16 %v859, %v855
        %v972 = vpack.c.b16 %v864, %v860
        %v973 = vpack.c.b16 %v865, %v861
        %v974 = vpack.c.b16 %v866, %v862
        %v975 = vpack.c.b16 %v867, %v863
        %v976 = vpack.c.b16 %v872, %v868
        %v977 = vpack.c.b16 %v873, %v869
        %v978 = vpack.c.b16 %v874, %v870
        %v979 = vpack.c.b16 %v875, %v871
        %v980 = vpack.c.b16 %v880, %v876
        %v981 = vpack.c.b16 %v881, %v877
        %v982 = vpack.c.b16 %v882, %v878
        %v983 = vpack.c.b16 %v883, %v879
        %v984 = vpack.c.b16 %v888, %v884
        %v985 = vpack.c.b16 %v889, %v885
        %v986 = vpack.c.b16 %v890, %v886
        %v987 = vpack.c.b16 %v891, %v887
        %v988 = vpack.c.b16 %v896, %v892
        %v989 = vpack.c.b16 %v897, %v893
        %v990 = vpack.c.b16 %v898, %v894
        %v991 = vpack.c.b16 %v899, %v895
        %v992 = vpack.c.b16 %v904, %v900
        %v993 = vpack.c.b16 %v905, %v901
        %v994 = vpack.c.b16 %v906, %v902
        %v995 = vpack.c.b16 %v907, %v903
        %v996 = vpack.c.b16 %v912, %v908
        %v997 = vpack.c.b16 %v913, %v909
        %v998 = vpack.c.b16 %v914, %v910
        %v999 = vpack.c.b16 %v915, %v911
        %v1000 = vpack.c.b16 %v920, %v916
        %v1001 = vpack.c.b16 %v921, %v917
        %v1002 = vpack.c.b16 %v922, %v918
        %v1003 = vpack.c.b16 %v923, %v919
        %v1004 = vpack.c.b16 %v928, %v924
        %v1005 = vpack.c.b16 %v929, %v925
        %v1006 = vpack.c.b16 %v930, %v926
        %v1007 = vpack.c.b16 %v931, %v927
        %v1008 = vpack.c.b16 %v936, %v932
        %v1009 = vpack.c.b16 %v937, %v933
        %v1010 = vpack.c.b16 %v938, %v934
        %v1011 = vpack.c.b16 %v939, %v935
        %v1012 = vpack.c.b16 %v944, %v940
        %v1013 = vpack.c.b16 %v945, %v941
        %v1014 = vpack.c.b16 %v946, %v942
        %v1015 = vpack.c.b16 %v947, %v943
        %v1016 = vpack.c.b16 %v952, %v948
        %v1017 = vpack.c.b16 %v953, %v949
        %v1018 = vpack.c.b16 %v954, %v950
        %v1019 = vpack.c.b16 %v955, %v951
        %1084 = vmatprep.subr.bf16.mxu0 %v957
        %1085 = vmatpush1.bf16.msra.mxu0 %v956
        %1086 = vmatprep.subr.bf16.mxu0 %v961
        %1087 = vmatpush1.bf16.msra.mxu0 %v960
        %1088 = vmatprep.subr.bf16.mxu0 %v965
        %1089 = vmatpush1.bf16.msra.mxu0 %v964
        %1090 = vmatprep.subr.bf16.mxu0 %v969
        %1091 = vmatpush1.bf16.msra.mxu0 %v968
        %1092 = vmatprep.subr.bf16.mxu0 %v973
        %1093 = vmatpush1.bf16.msra.mxu0 %v972
        %1094 = vmatprep.subr.bf16.mxu0 %v977
        %1095 = vmatpush1.bf16.msra.mxu0 %v976
        %1096 = vmatprep.subr.bf16.mxu0 %v981
        %1097 = vmatpush1.bf16.msra.mxu0 %v980
        %1098 = vmatprep.subr.bf16.mxu0 %v985
        %1099 = vmatpush1.bf16.msra.mxu0 %v984
        %1100 = vmatprep.subr.bf16.mxu0 %v989
        %1101 = vmatpush1.bf16.msra.mxu0 %v988
        %1102 = vmatprep.subr.bf16.mxu0 %v993
        %1103 = vmatpush1.bf16.msra.mxu0 %v992
        %1104 = vmatprep.subr.bf16.mxu0 %v997
        %1105 = vmatpush1.bf16.msra.mxu0 %v996
        %1106 = vmatprep.subr.bf16.mxu0 %v1001
        %1107 = vmatpush1.bf16.msra.mxu0 %v1000
        %1108 = vmatprep.subr.bf16.mxu0 %v1005
        %1109 = vmatpush1.bf16.msra.mxu0 %v1004
        %1110 = vmatprep.subr.bf16.mxu0 %v1009
        %1111 = vmatpush1.bf16.msra.mxu0 %v1008
        %1112 = vmatprep.subr.bf16.mxu0 %v1013
        %1113 = vmatpush1.bf16.msra.mxu0 %v1012
        %1114 = vmatprep.subr.bf16.mxu0 %v1017
        %1115 = vmatpush1.bf16.msra.mxu0 %v1016
        %1116 = vmatprep.mubr.bf16.mxu0 %v665
        %1117 = vmatmul.mubr.bf16.gmra.mrb[0].mxu0 %v664
        %v1118 = vpop.f32.mrb[0].mxu0
        %v1119 = vadd.f32 %v747, %v1118
        %v1120 = vpop.f32.mrb[0].mxu0
        %v1121 = vadd.f32 %v751, %v1120
        %v1122 = vpop.f32.mrb[0].mxu0
        %v1123 = vadd.f32 %v747, %v1122
        %v1124 = vpop.f32.mrb[0].mxu0
        %v1125 = vadd.f32 %v751, %v1124
        %1126 = vmatprep.mubr.bf16.mxu0 %v667
        %1127 = vmatmul.mubr.bf16.gmra.mrb[0].mxu0 %v666
        %v1128 = vpop.f32.mrb[0].mxu0
        %v1129 = vadd.f32 %v747, %v1128
        %v1130 = vpop.f32.mrb[0].mxu0
        %v1131 = vadd.f32 %v751, %v1130
        %v1132 = vpop.f32.mrb[0].mxu0
        %v1133 = vadd.f32 %v747, %v1132
        %v1134 = vpop.f32.mrb[0].mxu0
        %v1135 = vadd.f32 %v751, %v1134
        %1136 = vmatprep.mubr.bf16.mxu0 %v669
        %1137 = vmatmul.mubr.bf16.gmra.mrb[0].mxu0 %v668
        %v1138 = vpop.f32.mrb[0].mxu0
        %v1139 = vadd.f32 %v747, %v1138
        %v1140 = vpop.f32.mrb[0].mxu0
        %v1141 = vadd.f32 %v751, %v1140
        %v1142 = vpop.f32.mrb[0].mxu0
        %v1143 = vadd.f32 %v747, %v1142
        %v1144 = vpop.f32.mrb[0].mxu0
        %v1145 = vadd.f32 %v751, %v1144
        %1146 = vmatprep.mubr.bf16.mxu0 %v671
        %1147 = vmatmul.mubr.bf16.gmra.mrb[0].mxu0 %v670
        %v1148 = vpop.f32.mrb[0].mxu0
        %v1149 = vadd.f32 %v747, %v1148
        %v1150 = vpop.f32.mrb[0].mxu0
        %v1151 = vadd.f32 %v751, %v1150
        %v1152 = vpop.f32.mrb[0].mxu0
        %v1153 = vadd.f32 %v747, %v1152
        %v1154 = vpop.f32.mrb[0].mxu0
        %v1155 = vadd.f32 %v751, %v1154
        %1156 = vmatprep.mubr.bf16.mxu0 %v673
        %1157 = vmatmul.mubr.bf16.gmra.mrb[0].mxu0 %v672
        %v1158 = vpop.f32.mrb[0].mxu0
        %v1159 = vadd.f32 %v747, %v1158
        %v1160 = vpop.f32.mrb[0].mxu0
        %v1161 = vadd.f32 %v751, %v1160
        %v1162 = vpop.f32.mrb[0].mxu0
        %v1163 = vadd.f32 %v747, %v1162
        %v1164 = vpop.f32.mrb[0].mxu0
        %v1165 = vadd.f32 %v751, %v1164
        %1166 = vmatprep.mubr.bf16.mxu0 %v675
        %1167 = vmatmul.mubr.bf16.gmra.mrb[0].mxu0 %v674
        %v1168 = vpop.f32.mrb[0].mxu0
        %v1169 = vadd.f32 %v747, %v1168
        %v1170 = vpop.f32.mrb[0].mxu0
        %v1171 = vadd.f32 %v751, %v1170
        %v1172 = vpop.f32.mrb[0].mxu0
        %v1173 = vadd.f32 %v747, %v1172
        %v1174 = vpop.f32.mrb[0].mxu0
        %v1175 = vadd.f32 %v751, %v1174
        %1176 = vmatprep.mubr.bf16.mxu0 %v677
        %1177 = vmatmul.mubr.bf16.gmra.mrb[0].mxu0 %v676
        %v1178 = vpop.f32.mrb[0].mxu0
        %v1179 = vadd.f32 %v747, %v1178
        %v1180 = vpop.f32.mrb[0].mxu0
        %v1181 = vadd.f32 %v751, %v1180
        %v1182 = vpop.f32.mrb[0].mxu0
        %v1183 = vpop.f32.mrb[0].mxu0
        %1184 = vdwg.mxu0
        %1185 = vmatprep.subr.bf16.mxu0 %v959
        %1186 = vmatpush1.bf16.msra.mxu0 %v958
        %1187 = vmatprep.subr.bf16.mxu0 %v963
        %1188 = vmatpush1.bf16.msra.mxu0 %v962
        %1189 = vmatprep.subr.bf16.mxu0 %v967
        %1190 = vmatpush1.bf16.msra.mxu0 %v966
        %1191 = vmatprep.subr.bf16.mxu0 %v971
        %1192 = vmatpush1.bf16.msra.mxu0 %v970
        %1193 = vmatprep.subr.bf16.mxu0 %v975
        %1194 = vmatpush1.bf16.msra.mxu0 %v974
        %1195 = vmatprep.subr.bf16.mxu0 %v979
        %1196 = vmatpush1.bf16.msra.mxu0 %v978
        %1197 = vmatprep.subr.bf16.mxu0 %v983
        %1198 = vmatpush1.bf16.msra.mxu0 %v982
        %1199 = vmatprep.subr.bf16.mxu0 %v987
        %1200 = vmatpush1.bf16.msra.mxu0 %v986
        %1201 = vmatprep.subr.bf16.mxu0 %v991
        %1202 = vmatpush1.bf16.msra.mxu0 %v990
        %1203 = vmatprep.subr.bf16.mxu0 %v995
        %1204 = vmatpush1.bf16.msra.mxu0 %v994
        %1205 = vmatprep.subr.bf16.mxu0 %v999
        %1206 = vmatpush1.bf16.msra.mxu0 %v998
        %1207 = vmatprep.subr.bf16.mxu0 %v1003
        %1208 = vmatpush1.bf16.msra.mxu0 %v1002
        %1209 = vmatprep.subr.bf16.mxu0 %v1007
        %1210 = vmatpush1.bf16.msra.mxu0 %v1006
        %1211 = vmatprep.subr.bf16.mxu0 %v1011
        %1212 = vmatpush1.bf16.msra.mxu0 %v1010
        %1213 = vmatprep.subr.bf16.mxu0 %v1015
        %1214 = vmatpush1.bf16.msra.mxu0 %v1014
        %1215 = vmatprep.subr.bf16.mxu0 %v1019
        %1216 = vmatpush1.bf16.msra.mxu0 %v1018
        %1217 = vmatprep.mubr.bf16.mxu0 %v665
        %1218 = vmatmul.mubr.bf16.gmra.mrb[0].mxu0 %v664
        %v1219 = vpop.f32.mrb[0].mxu0
        %v1220 = vadd.f32 %v755, %v1219
        %v1221 = vpop.f32.mrb[0].mxu0
        %v1222 = vadd.f32 %v759, %v1221
        %v1223 = vpop.f32.mrb[0].mxu0
        %v1224 = vadd.f32 %v755, %v1223
        %v1225 = vpop.f32.mrb[0].mxu0
        %v1226 = vadd.f32 %v759, %v1225
        %1227 = vmatprep.mubr.bf16.mxu0 %v667
        %1228 = vmatmul.mubr.bf16.gmra.mrb[0].mxu0 %v666
        %v1229 = vpop.f32.mrb[0].mxu0
        %v1230 = vadd.f32 %v755, %v1229
        %v1231 = vpop.f32.mrb[0].mxu0
        %v1232 = vadd.f32 %v759, %v1231
        %v1233 = vpop.f32.mrb[0].mxu0
        %v1234 = vadd.f32 %v755, %v1233
        %v1235 = vpop.f32.mrb[0].mxu0
        %v1236 = vadd.f32 %v759, %v1235
        %1237 = vmatprep.mubr.bf16.mxu0 %v669
        %1238 = vmatmul.mubr.bf16.gmra.mrb[0].mxu0 %v668
        %v1239 = vpop.f32.mrb[0].mxu0
        %v1240 = vadd.f32 %v755, %v1239
        %v1241 = vpop.f32.mrb[0].mxu0
        %v1242 = vadd.f32 %v759, %v1241
        %v1243 = vpop.f32.mrb[0].mxu0
        %v1244 = vadd.f32 %v755, %v1243
        %v1245 = vpop.f32.mrb[0].mxu0
        %v1246 = vadd.f32 %v759, %v1245
        %1247 = vmatprep.mubr.bf16.mxu0 %v671
        %1248 = vmatmul.mubr.bf16.gmra.mrb[0].mxu0 %v670
        %v1249 = vpop.f32.mrb[0].mxu0
        %v1250 = vadd.f32 %v755, %v1249
        %v1251 = vpop.f32.mrb[0].mxu0
        %v1252 = vadd.f32 %v759, %v1251
        %v1253 = vpop.f32.mrb[0].mxu0
        %v1254 = vadd.f32 %v755, %v1253
        %v1255 = vpop.f32.mrb[0].mxu0
        %v1256 = vadd.f32 %v759, %v1255
        %1257 = vmatprep.mubr.bf16.mxu0 %v673
        %1258 = vmatmul.mubr.bf16.gmra.mrb[0].mxu0 %v672
        %v1259 = vpop.f32.mrb[0].mxu0
        %v1260 = vadd.f32 %v755, %v1259
        %v1261 = vpop.f32.mrb[0].mxu0
        %v1262 = vadd.f32 %v759, %v1261
        %v1263 = vpop.f32.mrb[0].mxu0
        %v1264 = vadd.f32 %v755, %v1263
        %v1265 = vpop.f32.mrb[0].mxu0
        %v1266 = vadd.f32 %v759, %v1265
        %1267 = vmatprep.mubr.bf16.mxu0 %v675
        %1268 = vmatmul.mubr.bf16.gmra.mrb[0].mxu0 %v674
        %v1269 = vpop.f32.mrb[0].mxu0
        %v1270 = vadd.f32 %v755, %v1269
        %v1271 = vpop.f32.mrb[0].mxu0
        %v1272 = vadd.f32 %v759, %v1271
        %v1273 = vpop.f32.mrb[0].mxu0
        %v1274 = vadd.f32 %v755, %v1273
        %v1275 = vpop.f32.mrb[0].mxu0
        %v1276 = vadd.f32 %v759, %v1275
        %1277 = vmatprep.mubr.bf16.mxu0 %v677
        %1278 = vmatmul.mubr.bf16.gmra.mrb[0].mxu0 %v676
        %v1279 = vpop.f32.mrb[0].mxu0
        %v1280 = vadd.f32 %v755, %v1279
        %v1281 = vpop.f32.mrb[0].mxu0
        %v1282 = vadd.f32 %v759, %v1281
        %v1283 = vpop.f32.mrb[0].mxu0
        %v1284 = vpop.f32.mrb[0].mxu0
        %1285 = vdwg.mxu0
        %v1286 = vmax.f32 %v1119, 0.0
        %v1287 = vmax.f32 %v1121, 0.0
        %v1288 = vmax.f32 %v1220, 0.0
        %v1289 = vmax.f32 %v1222, 0.0
        %v1290 = vmax.f32 %v1123, 0.0
        %v1291 = vmax.f32 %v1125, 0.0
        %v1292 = vmax.f32 %v1224, 0.0
        %v1293 = vmax.f32 %v1226, 0.0
        %v1294 = vmax.f32 %v1129, 0.0
        %v1295 = vmax.f32 %v1131, 0.0
        %v1296 = vmax.f32 %v1230, 0.0
        %v1297 = vmax.f32 %v1232, 0.0
        %v1298 = vmax.f32 %v1133, 0.0
        %v1299 = vmax.f32 %v1135, 0.0
        %v1300 = vmax.f32 %v1234, 0.0
        %v1301 = vmax.f32 %v1236, 0.0
        %v1302 = vmax.f32 %v1139, 0.0
        %v1303 = vmax.f32 %v1141, 0.0
        %v1304 = vmax.f32 %v1240, 0.0
        %v1305 = vmax.f32 %v1242, 0.0
        %v1306 = vmax.f32 %v1143, 0.0
        %v1307 = vmax.f32 %v1145, 0.0
        %v1308 = vmax.f32 %v1244, 0.0
        %v1309 = vmax.f32 %v1246, 0.0
        %v1310 = vmax.f32 %v1149, 0.0
        %v1311 = vmax.f32 %v1151, 0.0
        %v1312 = vmax.f32 %v1250, 0.0
        %v1313 = vmax.f32 %v1252, 0.0
        %v1314 = vmax.f32 %v1153, 0.0
        %v1315 = vmax.f32 %v1155, 0.0
        %v1316 = vmax.f32 %v1254, 0.0
        %v1317 = vmax.f32 %v1256, 0.0
        %v1318 = vmax.f32 %v1159, 0.0
        %v1319 = vmax.f32 %v1161, 0.0
        %v1320 = vmax.f32 %v1260, 0.0
        %v1321 = vmax.f32 %v1262, 0.0
        %v1322 = vmax.f32 %v1163, 0.0
        %v1323 = vmax.f32 %v1165, 0.0
        %v1324 = vmax.f32 %v1264, 0.0
        %v1325 = vmax.f32 %v1266, 0.0
        %v1326 = vmax.f32 %v1169, 0.0
        %v1327 = vmax.f32 %v1171, 0.0
        %v1328 = vmax.f32 %v1270, 0.0
        %v1329 = vmax.f32 %v1272, 0.0
        %v1330 = vmax.f32 %v1173, 0.0
        %v1331 = vmax.f32 %v1175, 0.0
        %v1332 = vmax.f32 %v1274, 0.0
        %v1333 = vmax.f32 %v1276, 0.0
        %v1334 = vmax.f32 %v1179, 0.0
        %v1335 = vmax.f32 %v1181, 0.0
        %v1336 = vmax.f32 %v1280, 0.0
        %v1337 = vmax.f32 %v1282, 0.0
        %v1338 = vpack.c.bf16 %v1290, %v1286
        %v1339 = vpack.c.bf16 %v1291, %v1287
        %v1340 = vpack.c.bf16 %v1292, %v1288
        %v1341 = vpack.c.bf16 %v1293, %v1289
        %v1342 = vpack.c.bf16 %v1298, %v1294
        %v1343 = vpack.c.bf16 %v1299, %v1295
        %v1344 = vpack.c.bf16 %v1300, %v1296
        %v1345 = vpack.c.bf16 %v1301, %v1297
        %v1346 = vpack.c.bf16 %v1306, %v1302
        %v1347 = vpack.c.bf16 %v1307, %v1303
        %v1348 = vpack.c.bf16 %v1308, %v1304
        %v1349 = vpack.c.bf16 %v1309, %v1305
        %v1350 = vpack.c.bf16 %v1314, %v1310
        %v1351 = vpack.c.bf16 %v1315, %v1311
        %v1352 = vpack.c.bf16 %v1316, %v1312
        %v1353 = vpack.c.bf16 %v1317, %v1313
        %v1354 = vpack.c.bf16 %v1322, %v1318
        %v1355 = vpack.c.bf16 %v1323, %v1319
        %v1356 = vpack.c.bf16 %v1324, %v1320
        %v1357 = vpack.c.bf16 %v1325, %v1321
        %v1358 = vpack.c.bf16 %v1330, %v1326
        %v1359 = vpack.c.bf16 %v1331, %v1327
        %v1360 = vpack.c.bf16 %v1332, %v1328
        %v1361 = vpack.c.bf16 %v1333, %v1329
        %v1362 = vpack.c.bf16 %v1334, %v1334
        %v1363 = vpack.c.bf16 %v1335, %v1335
        %v1364 = vpack.c.bf16 %v1336, %v1336
        %v1365 = vpack.c.bf16 %v1337, %v1337
        %v1366 = vld [vmem:[#allocation4] sm:$0xff]
        %v1367 = vld [vmem:[#allocation4 + $0x8] sm:$0xff]
        %v1368 = vld [vmem:[#allocation4 + $0x10] sm:$0xff]
        %v1369 = vld [vmem:[#allocation4 + $0x18] sm:$0xff]
        %v1370 = vld [vmem:[#allocation4 + $0x20] sm:$0xff]
        %v1371 = vld [vmem:[#allocation4 + $0x28] sm:$0xff]
        %v1372 = vld [vmem:[#allocation4 + $0x30] sm:$0xff]
        %v1373 = vld [vmem:[#allocation4 + $0x38] sm:$0xff]
        %v1374 = vld [vmem:[#allocation4 + $0x40] sm:$0xff]
        %v1375 = vld [vmem:[#allocation4 + $0x48] sm:$0xff]
        %v1376 = vld [vmem:[#allocation4 + $0x50] sm:$0xff]
        %v1377 = vld [vmem:[#allocation4 + $0x58] sm:$0xff]
        %v1378 = vld [vmem:[#allocation4 + $0x60] sm:$0xff]
        %v1379 = vld [vmem:[#allocation4 + $0x68] sm:$0xff]
        %v1380 = vld [vmem:[#allocation4 + $0x70] sm:$0xff]
        %v1381 = vld [vmem:[#allocation4 + $0x78] sm:$0xff]
        %v1382 = vld [vmem:[#allocation4 + $0x80] sm:$0xff]
        %v1383 = vld [vmem:[#allocation4 + $0x88] sm:$0xff]
        %v1384 = vld [vmem:[#allocation4 + $0x90] sm:$0xff]
        %v1385 = vld [vmem:[#allocation4 + $0x98] sm:$0xff]
        %v1386 = vld [vmem:[#allocation4 + $0xa0] sm:$0xff]
        %v1387 = vld [vmem:[#allocation4 + $0xa8] sm:$0xff]
        %v1388 = vld [vmem:[#allocation4 + $0xb0] sm:$0xff]
        %v1389 = vld [vmem:[#allocation4 + $0xb8] sm:$0xff]
        %v1390 = vld [vmem:[#allocation4 + $0xc0] sm:$0xff]
        %v1391 = vld [vmem:[#allocation4 + $0xc8] sm:$0xff]
        %v1392 = vld [vmem:[#allocation4 + $0xd0] sm:$0xff]
        %v1393 = vld [vmem:[#allocation4 + $0xd8] sm:$0xff]
        %v1394 = vld [vmem:[#allocation4 + $0xe0] sm:$0xff]
        %v1395 = vld [vmem:[#allocation4 + $0xe8] sm:$0xff]
        %v1396 = vld [vmem:[#allocation4 + $0xf0] sm:$0xff]
        %v1397 = vld [vmem:[#allocation4 + $0xf8] sm:$0xff]
        %v1398 = vld [vmem:[#allocation4 + $0x100] sm:$0xff]
        %v1399 = vld [vmem:[#allocation4 + $0x108] sm:$0xff]
        %v1400 = vld [vmem:[#allocation4 + $0x110] sm:$0xff]
        %v1401 = vld [vmem:[#allocation4 + $0x118] sm:$0xff]
        %v1402 = vld [vmem:[#allocation4 + $0x120] sm:$0xff]
        %v1403 = vld [vmem:[#allocation4 + $0x128] sm:$0xff]
        %v1404 = vld [vmem:[#allocation4 + $0x130] sm:$0xff]
        %v1405 = vld [vmem:[#allocation4 + $0x138] sm:$0xff]
        %v1406 = vld [vmem:[#allocation4 + $0x140] sm:$0xff]
        %v1407 = vld [vmem:[#allocation4 + $0x148] sm:$0xff]
        %v1408 = vld [vmem:[#allocation4 + $0x150] sm:$0xff]
        %v1409 = vld [vmem:[#allocation4 + $0x158] sm:$0xff]
        %v1410 = vld [vmem:[#allocation4 + $0x160] sm:$0xff]
        %v1411 = vld [vmem:[#allocation4 + $0x168] sm:$0xff]
        %v1412 = vld [vmem:[#allocation4 + $0x170] sm:$0xff]
        %v1413 = vld [vmem:[#allocation4 + $0x178] sm:$0xff]
        %v1414 = vld [vmem:[#allocation4 + $0x180] sm:$0xff]
        %v1415 = vld [vmem:[#allocation4 + $0x188] sm:$0xff]
        %v1416 = vld [vmem:[#allocation4 + $0x190] sm:$0xff]
        %v1417 = vld [vmem:[#allocation4 + $0x198] sm:$0xff]
        %v1418 = vld [vmem:[#allocation4 + $0x1a0] sm:$0xff]
        %v1419 = vld [vmem:[#allocation4 + $0x1a8] sm:$0xff]
        %v1420 = vld [vmem:[#allocation4 + $0x1b0] sm:$0xff]
        %v1421 = vld [vmem:[#allocation4 + $0x1b8] sm:$0xff]
        %v1422 = vld [vmem:[#allocation4 + $0x1c0] sm:$0xff]
        %v1423 = vld [vmem:[#allocation4 + $0x1c8] sm:$0xff]
        %v1424 = vld [vmem:[#allocation4 + $0x1d0] sm:$0xff]
        %v1425 = vld [vmem:[#allocation4 + $0x1d8] sm:$0xff]
        %v1426 = vld [vmem:[#allocation4 + $0x1e0] sm:$0xff]
        %v1427 = vld [vmem:[#allocation4 + $0x1e8] sm:$0xff]
        %v1428 = vld [vmem:[#allocation4 + $0x1f0] sm:$0xff]
        %v1429 = vld [vmem:[#allocation4 + $0x1f8] sm:$0xff]
        %v1430 = vld [vmem:[%s6] sm:$0x3]
        %v1432 = vlaneseq
        %v1433 = vshrl.u32 %v1432, 7
        %v1434 = vsub.s32 0, %v1433
        %v1435 = vrot.slane %v1430, %v1434
        %v1436 = vlaneseq
        %v1437 = vshrl.u32 %v1436, 7
        %v1438 = vsub.s32 1, %v1437
        %v1439 = vrot.slane %v1430, %v1438
        %v1506 = vunpack.c.l.b16 %v1366
        %v1507 = vunpack.c.h.b16 %v1366
        %v1508 = vunpack.c.l.b16 %v1367
        %v1509 = vunpack.c.h.b16 %v1367
        %v1510 = vunpack.c.l.b16 %v1368
        %v1511 = vunpack.c.h.b16 %v1368
        %v1512 = vunpack.c.l.b16 %v1369
        %v1513 = vunpack.c.h.b16 %v1369
        %v1514 = vunpack.c.l.b16 %v1370
        %v1515 = vunpack.c.h.b16 %v1370
        %v1516 = vunpack.c.l.b16 %v1371
        %v1517 = vunpack.c.h.b16 %v1371
        %v1518 = vunpack.c.l.b16 %v1372
        %v1519 = vunpack.c.h.b16 %v1372
        %v1520 = vunpack.c.l.b16 %v1373
        %v1521 = vunpack.c.h.b16 %v1373
        %v1522 = vunpack.c.l.b16 %v1374
        %v1523 = vunpack.c.h.b16 %v1374
        %v1524 = vunpack.c.l.b16 %v1375
        %v1525 = vunpack.c.h.b16 %v1375
        %v1526 = vunpack.c.l.b16 %v1376
        %v1527 = vunpack.c.h.b16 %v1376
        %v1528 = vunpack.c.l.b16 %v1377
        %v1529 = vunpack.c.h.b16 %v1377
        %v1530 = vunpack.c.l.b16 %v1378
        %v1531 = vunpack.c.h.b16 %v1378
        %v1532 = vunpack.c.l.b16 %v1379
        %v1533 = vunpack.c.h.b16 %v1379
        %v1534 = vunpack.c.l.b16 %v1380
        %v1535 = vunpack.c.h.b16 %v1380
        %v1536 = vunpack.c.l.b16 %v1381
        %v1537 = vunpack.c.h.b16 %v1381
        %v1538 = vunpack.c.l.b16 %v1382
        %v1539 = vunpack.c.h.b16 %v1382
        %v1540 = vunpack.c.l.b16 %v1383
        %v1541 = vunpack.c.h.b16 %v1383
        %v1542 = vunpack.c.l.b16 %v1384
        %v1543 = vunpack.c.h.b16 %v1384
        %v1544 = vunpack.c.l.b16 %v1385
        %v1545 = vunpack.c.h.b16 %v1385
        %v1546 = vunpack.c.l.b16 %v1386
        %v1547 = vunpack.c.h.b16 %v1386
        %v1548 = vunpack.c.l.b16 %v1387
        %v1549 = vunpack.c.h.b16 %v1387
        %v1550 = vunpack.c.l.b16 %v1388
        %v1551 = vunpack.c.h.b16 %v1388
        %v1552 = vunpack.c.l.b16 %v1389
        %v1553 = vunpack.c.h.b16 %v1389
        %v1554 = vunpack.c.l.b16 %v1390
        %v1555 = vunpack.c.h.b16 %v1390
        %v1556 = vunpack.c.l.b16 %v1391
        %v1557 = vunpack.c.h.b16 %v1391
        %v1558 = vunpack.c.l.b16 %v1392
        %v1559 = vunpack.c.h.b16 %v1392
        %v1560 = vunpack.c.l.b16 %v1393
        %v1561 = vunpack.c.h.b16 %v1393
        %v1562 = vunpack.c.l.b16 %v1394
        %v1563 = vunpack.c.h.b16 %v1394
        %v1564 = vunpack.c.l.b16 %v1395
        %v1565 = vunpack.c.h.b16 %v1395
        %v1566 = vunpack.c.l.b16 %v1396
        %v1567 = vunpack.c.h.b16 %v1396
        %v1568 = vunpack.c.l.b16 %v1397
        %v1569 = vunpack.c.h.b16 %v1397
        %v1570 = vunpack.c.l.b16 %v1398
        %v1571 = vunpack.c.h.b16 %v1398
        %v1572 = vunpack.c.l.b16 %v1399
        %v1573 = vunpack.c.h.b16 %v1399
        %v1574 = vunpack.c.l.b16 %v1400
        %v1575 = vunpack.c.h.b16 %v1400
        %v1576 = vunpack.c.l.b16 %v1401
        %v1577 = vunpack.c.h.b16 %v1401
        %v1578 = vunpack.c.l.b16 %v1402
        %v1579 = vunpack.c.h.b16 %v1402
        %v1580 = vunpack.c.l.b16 %v1403
        %v1581 = vunpack.c.h.b16 %v1403
        %v1582 = vunpack.c.l.b16 %v1404
        %v1583 = vunpack.c.h.b16 %v1404
        %v1584 = vunpack.c.l.b16 %v1405
        %v1585 = vunpack.c.h.b16 %v1405
        %v1586 = vunpack.c.l.b16 %v1406
        %v1587 = vunpack.c.h.b16 %v1406
        %v1588 = vunpack.c.l.b16 %v1407
        %v1589 = vunpack.c.h.b16 %v1407
        %v1590 = vunpack.c.l.b16 %v1408
        %v1591 = vunpack.c.h.b16 %v1408
        %v1592 = vunpack.c.l.b16 %v1409
        %v1593 = vunpack.c.h.b16 %v1409
        %v1594 = vunpack.c.l.b16 %v1410
        %v1595 = vunpack.c.h.b16 %v1410
        %v1596 = vunpack.c.l.b16 %v1411
        %v1597 = vunpack.c.h.b16 %v1411
        %v1598 = vunpack.c.l.b16 %v1412
        %v1599 = vunpack.c.h.b16 %v1412
        %v1600 = vunpack.c.l.b16 %v1413
        %v1601 = vunpack.c.h.b16 %v1413
        %v1602 = vunpack.c.l.b16 %v1414
        %v1603 = vunpack.c.h.b16 %v1414
        %v1604 = vunpack.c.l.b16 %v1415
        %v1605 = vunpack.c.h.b16 %v1415
        %v1606 = vunpack.c.l.b16 %v1416
        %v1607 = vunpack.c.h.b16 %v1416
        %v1608 = vunpack.c.l.b16 %v1417
        %v1609 = vunpack.c.h.b16 %v1417
        %v1610 = vunpack.c.l.b16 %v1418
        %v1611 = vunpack.c.h.b16 %v1418
        %v1612 = vunpack.c.l.b16 %v1419
        %v1613 = vunpack.c.h.b16 %v1419
        %v1614 = vunpack.c.l.b16 %v1420
        %v1615 = vunpack.c.h.b16 %v1420
        %v1616 = vunpack.c.l.b16 %v1421
        %v1617 = vunpack.c.h.b16 %v1421
        %v1618 = vunpack.c.l.b16 %v1422
        %v1619 = vunpack.c.h.b16 %v1422
        %v1620 = vunpack.c.l.b16 %v1423
        %v1621 = vunpack.c.h.b16 %v1423
        %v1622 = vunpack.c.l.b16 %v1424
        %v1623 = vunpack.c.h.b16 %v1424
        %v1624 = vunpack.c.l.b16 %v1425
        %v1625 = vunpack.c.h.b16 %v1425
        %v1626 = vunpack.c.l.b16 %v1426
        %v1627 = vunpack.c.h.b16 %v1426
        %v1628 = vunpack.c.l.b16 %v1427
        %v1629 = vunpack.c.h.b16 %v1427
        %v1630 = vunpack.c.l.b16 %v1428
        %v1631 = vunpack.c.h.b16 %v1428
        %v1632 = vunpack.c.l.b16 %v1429
        %v1633 = vunpack.c.h.b16 %v1429
        %v1634 = vpack.c.b16 %v1508, %v1506
        %v1635 = vpack.c.b16 %v1509, %v1507
        %v1636 = vpack.c.b16 %v1512, %v1510
        %v1637 = vpack.c.b16 %v1513, %v1511
        %v1638 = vpack.c.b16 %v1516, %v1514
        %v1639 = vpack.c.b16 %v1517, %v1515
        %v1640 = vpack.c.b16 %v1520, %v1518
        %v1641 = vpack.c.b16 %v1521, %v1519
        %v1642 = vpack.c.b16 %v1524, %v1522
        %v1643 = vpack.c.b16 %v1525, %v1523
        %v1644 = vpack.c.b16 %v1528, %v1526
        %v1645 = vpack.c.b16 %v1529, %v1527
        %v1646 = vpack.c.b16 %v1532, %v1530
        %v1647 = vpack.c.b16 %v1533, %v1531
        %v1648 = vpack.c.b16 %v1536, %v1534
        %v1649 = vpack.c.b16 %v1537, %v1535
        %v1650 = vpack.c.b16 %v1540, %v1538
        %v1651 = vpack.c.b16 %v1541, %v1539
        %v1652 = vpack.c.b16 %v1544, %v1542
        %v1653 = vpack.c.b16 %v1545, %v1543
        %v1654 = vpack.c.b16 %v1548, %v1546
        %v1655 = vpack.c.b16 %v1549, %v1547
        %v1656 = vpack.c.b16 %v1552, %v1550
        %v1657 = vpack.c.b16 %v1553, %v1551
        %v1658 = vpack.c.b16 %v1556, %v1554
        %v1659 = vpack.c.b16 %v1557, %v1555
        %v1660 = vpack.c.b16 %v1560, %v1558
        %v1661 = vpack.c.b16 %v1561, %v1559
        %v1662 = vpack.c.b16 %v1564, %v1562
        %v1663 = vpack.c.b16 %v1565, %v1563
        %v1664 = vpack.c.b16 %v1568, %v1566
        %v1665 = vpack.c.b16 %v1569, %v1567
        %v1666 = vpack.c.b16 %v1572, %v1570
        %v1667 = vpack.c.b16 %v1573, %v1571
        %v1668 = vpack.c.b16 %v1576, %v1574
        %v1669 = vpack.c.b16 %v1577, %v1575
        %v1670 = vpack.c.b16 %v1580, %v1578
        %v1671 = vpack.c.b16 %v1581, %v1579
        %v1672 = vpack.c.b16 %v1584, %v1582
        %v1673 = vpack.c.b16 %v1585, %v1583
        %v1674 = vpack.c.b16 %v1588, %v1586
        %v1675 = vpack.c.b16 %v1589, %v1587
        %v1676 = vpack.c.b16 %v1592, %v1590
        %v1677 = vpack.c.b16 %v1593, %v1591
        %v1678 = vpack.c.b16 %v1596, %v1594
        %v1679 = vpack.c.b16 %v1597, %v1595
        %v1680 = vpack.c.b16 %v1600, %v1598
        %v1681 = vpack.c.b16 %v1601, %v1599
        %v1682 = vpack.c.b16 %v1604, %v1602
        %v1683 = vpack.c.b16 %v1605, %v1603
        %v1684 = vpack.c.b16 %v1608, %v1606
        %v1685 = vpack.c.b16 %v1609, %v1607
        %v1686 = vpack.c.b16 %v1612, %v1610
        %v1687 = vpack.c.b16 %v1613, %v1611
        %v1688 = vpack.c.b16 %v1616, %v1614
        %v1689 = vpack.c.b16 %v1617, %v1615
        %v1690 = vpack.c.b16 %v1620, %v1618
        %v1691 = vpack.c.b16 %v1621, %v1619
        %v1692 = vpack.c.b16 %v1624, %v1622
        %v1693 = vpack.c.b16 %v1625, %v1623
        %v1694 = vpack.c.b16 %v1628, %v1626
        %v1695 = vpack.c.b16 %v1629, %v1627
        %v1696 = vpack.c.b16 %v1632, %v1630
        %v1697 = vpack.c.b16 %v1633, %v1631
        %1762 = vmatprep.subr.bf16.mxu0 %v1635
        %1763 = vmatpush1.bf16.msra.mxu0 %v1634
        %1764 = vmatprep.subr.bf16.mxu0 %v1637
        %1765 = vmatpush1.bf16.msra.mxu0 %v1636
        %1766 = vmatprep.subr.bf16.mxu0 %v1639
        %1767 = vmatpush1.bf16.msra.mxu0 %v1638
        %1768 = vmatprep.subr.bf16.mxu0 %v1641
        %1769 = vmatpush1.bf16.msra.mxu0 %v1640
        %1770 = vmatprep.subr.bf16.mxu0 %v1643
        %1771 = vmatpush1.bf16.msra.mxu0 %v1642
        %1772 = vmatprep.subr.bf16.mxu0 %v1645
        %1773 = vmatpush1.bf16.msra.mxu0 %v1644
        %1774 = vmatprep.subr.bf16.mxu0 %v1647
        %1775 = vmatpush1.bf16.msra.mxu0 %v1646
        %1776 = vmatprep.subr.bf16.mxu0 %v1649
        %1777 = vmatpush1.bf16.msra.mxu0 %v1648
        %1778 = vmatprep.subr.bf16.mxu0 %v1651
        %1779 = vmatpush1.bf16.msra.mxu0 %v1650
        %1780 = vmatprep.subr.bf16.mxu0 %v1653
        %1781 = vmatpush1.bf16.msra.mxu0 %v1652
        %1782 = vmatprep.subr.bf16.mxu0 %v1655
        %1783 = vmatpush1.bf16.msra.mxu0 %v1654
        %1784 = vmatprep.subr.bf16.mxu0 %v1657
        %1785 = vmatpush1.bf16.msra.mxu0 %v1656
        %1786 = vmatprep.subr.bf16.mxu0 %v1659
        %1787 = vmatpush1.bf16.msra.mxu0 %v1658
        %1788 = vmatprep.subr.bf16.mxu0 %v1661
        %1789 = vmatpush1.bf16.msra.mxu0 %v1660
        %1790 = vmatprep.subr.bf16.mxu0 %v1663
        %1791 = vmatpush1.bf16.msra.mxu0 %v1662
        %1792 = vmatprep.subr.bf16.mxu0 %v1665
        %1793 = vmatpush1.bf16.msra.mxu0 %v1664
        %1794 = vmatprep.mubr.bf16.mxu0 %v1339
        %1795 = vmatmul.mubr.bf16.gmra.mrb[0].mxu0 %v1338
        %v1796 = vpop.f32.mrb[0].mxu0
        %v1797 = vadd.f32 %v1435, %v1796
        %v1798 = vpop.f32.mrb[0].mxu0
        %v1799 = vadd.f32 %v1439, %v1798
        %v1800 = vpop.f32.mrb[0].mxu0
        %v1801 = vadd.f32 %v1435, %v1800
        %v1802 = vpop.f32.mrb[0].mxu0
        %v1803 = vadd.f32 %v1439, %v1802
        %1804 = vmatprep.mubr.bf16.mxu0 %v1343
        %1805 = vmatmul.mubr.bf16.gmra.mrb[0].mxu0 %v1342
        %v1806 = vpop.f32.mrb[0].mxu0
        %v1807 = vadd.f32 %v1435, %v1806
        %v1808 = vpop.f32.mrb[0].mxu0
        %v1809 = vadd.f32 %v1439, %v1808
        %v1810 = vpop.f32.mrb[0].mxu0
        %v1811 = vadd.f32 %v1435, %v1810
        %v1812 = vpop.f32.mrb[0].mxu0
        %v1813 = vadd.f32 %v1439, %v1812
        %1814 = vmatprep.mubr.bf16.mxu0 %v1347
        %1815 = vmatmul.mubr.bf16.gmra.mrb[0].mxu0 %v1346
        %v1816 = vpop.f32.mrb[0].mxu0
        %v1817 = vadd.f32 %v1435, %v1816
        %v1818 = vpop.f32.mrb[0].mxu0
        %v1819 = vadd.f32 %v1439, %v1818
        %v1820 = vpop.f32.mrb[0].mxu0
        %v1821 = vadd.f32 %v1435, %v1820
        %v1822 = vpop.f32.mrb[0].mxu0
        %v1823 = vadd.f32 %v1439, %v1822
        %1824 = vmatprep.mubr.bf16.mxu0 %v1351
        %1825 = vmatmul.mubr.bf16.gmra.mrb[0].mxu0 %v1350
        %v1826 = vpop.f32.mrb[0].mxu0
        %v1827 = vadd.f32 %v1435, %v1826
        %v1828 = vpop.f32.mrb[0].mxu0
        %v1829 = vadd.f32 %v1439, %v1828
        %v1830 = vpop.f32.mrb[0].mxu0
        %v1831 = vadd.f32 %v1435, %v1830
        %v1832 = vpop.f32.mrb[0].mxu0
        %v1833 = vadd.f32 %v1439, %v1832
        %1834 = vmatprep.mubr.bf16.mxu0 %v1355
        %1835 = vmatmul.mubr.bf16.gmra.mrb[0].mxu0 %v1354
        %v1836 = vpop.f32.mrb[0].mxu0
        %v1837 = vadd.f32 %v1435, %v1836
        %v1838 = vpop.f32.mrb[0].mxu0
        %v1839 = vadd.f32 %v1439, %v1838
        %v1840 = vpop.f32.mrb[0].mxu0
        %v1841 = vadd.f32 %v1435, %v1840
        %v1842 = vpop.f32.mrb[0].mxu0
        %v1843 = vadd.f32 %v1439, %v1842
        %1844 = vmatprep.mubr.bf16.mxu0 %v1359
        %1845 = vmatmul.mubr.bf16.gmra.mrb[0].mxu0 %v1358
        %v1846 = vpop.f32.mrb[0].mxu0
        %v1847 = vadd.f32 %v1435, %v1846
        %v1848 = vpop.f32.mrb[0].mxu0
        %v1849 = vadd.f32 %v1439, %v1848
        %v1850 = vpop.f32.mrb[0].mxu0
        %v1851 = vadd.f32 %v1435, %v1850
        %v1852 = vpop.f32.mrb[0].mxu0
        %v1853 = vadd.f32 %v1439, %v1852
        %1854 = vmatprep.mubr.bf16.mxu0 %v1363
        %1855 = vmatmul.mubr.bf16.gmra.mrb[0].mxu0 %v1362
        %v1856 = vpop.f32.mrb[0].mxu0
        %v1857 = vadd.f32 %v1435, %v1856
        %v1858 = vpop.f32.mrb[0].mxu0
        %v1859 = vadd.f32 %v1439, %v1858
        %v1860 = vpop.f32.mrb[0].mxu0
        %v1861 = vpop.f32.mrb[0].mxu0
        %1862 = vdwg.mxu0
        %1863 = vmatprep.subr.bf16.mxu0 %v1667
        %1864 = vmatpush1.bf16.msra.mxu0 %v1666
        %1865 = vmatprep.subr.bf16.mxu0 %v1669
        %1866 = vmatpush1.bf16.msra.mxu0 %v1668
        %1867 = vmatprep.subr.bf16.mxu0 %v1671
        %1868 = vmatpush1.bf16.msra.mxu0 %v1670
        %1869 = vmatprep.subr.bf16.mxu0 %v1673
        %1870 = vmatpush1.bf16.msra.mxu0 %v1672
        %1871 = vmatprep.subr.bf16.mxu0 %v1675
        %1872 = vmatpush1.bf16.msra.mxu0 %v1674
        %1873 = vmatprep.subr.bf16.mxu0 %v1677
        %1874 = vmatpush1.bf16.msra.mxu0 %v1676
        %1875 = vmatprep.subr.bf16.mxu0 %v1679
        %1876 = vmatpush1.bf16.msra.mxu0 %v1678
        %1877 = vmatprep.subr.bf16.mxu0 %v1681
        %1878 = vmatpush1.bf16.msra.mxu0 %v1680
        %1879 = vmatprep.subr.bf16.mxu0 %v1683
        %1880 = vmatpush1.bf16.msra.mxu0 %v1682
        %1881 = vmatprep.subr.bf16.mxu0 %v1685
        %1882 = vmatpush1.bf16.msra.mxu0 %v1684
        %1883 = vmatprep.subr.bf16.mxu0 %v1687
        %1884 = vmatpush1.bf16.msra.mxu0 %v1686
        %1885 = vmatprep.subr.bf16.mxu0 %v1689
        %1886 = vmatpush1.bf16.msra.mxu0 %v1688
        %1887 = vmatprep.subr.bf16.mxu0 %v1691
        %1888 = vmatpush1.bf16.msra.mxu0 %v1690
        %1889 = vmatprep.subr.bf16.mxu0 %v1693
        %1890 = vmatpush1.bf16.msra.mxu0 %v1692
        %1891 = vmatprep.subr.bf16.mxu0 %v1695
        %1892 = vmatpush1.bf16.msra.mxu0 %v1694
        %1893 = vmatprep.subr.bf16.mxu0 %v1697
        %1894 = vmatpush1.bf16.msra.mxu0 %v1696
        %1895 = vmatprep.mubr.bf16.mxu0 %v1341
        %1896 = vmatmul.mubr.bf16.gmra.mrb[0].mxu0 %v1340
        %v1897 = vpop.f32.mrb[0].mxu0
        %v1898 = vadd.f32 %v1797, %v1897
        %v1899 = vpop.f32.mrb[0].mxu0
        %v1900 = vadd.f32 %v1799, %v1899
        %v1901 = vpop.f32.mrb[0].mxu0
        %v1902 = vadd.f32 %v1801, %v1901
        %v1903 = vpop.f32.mrb[0].mxu0
        %v1904 = vadd.f32 %v1803, %v1903
        %1905 = vmatprep.mubr.bf16.mxu0 %v1345
        %1906 = vmatmul.mubr.bf16.gmra.mrb[0].mxu0 %v1344
        %v1907 = vpop.f32.mrb[0].mxu0
        %v1908 = vadd.f32 %v1807, %v1907
        %v1909 = vpop.f32.mrb[0].mxu0
        %v1910 = vadd.f32 %v1809, %v1909
        %v1911 = vpop.f32.mrb[0].mxu0
        %v1912 = vadd.f32 %v1811, %v1911
        %v1913 = vpop.f32.mrb[0].mxu0
        %v1914 = vadd.f32 %v1813, %v1913
        %1915 = vmatprep.mubr.bf16.mxu0 %v1349
        %1916 = vmatmul.mubr.bf16.gmra.mrb[0].mxu0 %v1348
        %v1917 = vpop.f32.mrb[0].mxu0
        %v1918 = vadd.f32 %v1817, %v1917
        %v1919 = vpop.f32.mrb[0].mxu0
        %v1920 = vadd.f32 %v1819, %v1919
        %v1921 = vpop.f32.mrb[0].mxu0
        %v1922 = vadd.f32 %v1821, %v1921
        %v1923 = vpop.f32.mrb[0].mxu0
        %v1924 = vadd.f32 %v1823, %v1923
        %1925 = vmatprep.mubr.bf16.mxu0 %v1353
        %1926 = vmatmul.mubr.bf16.gmra.mrb[0].mxu0 %v1352
        %v1927 = vpop.f32.mrb[0].mxu0
        %v1928 = vadd.f32 %v1827, %v1927
        %v1929 = vpop.f32.mrb[0].mxu0
        %v1930 = vadd.f32 %v1829, %v1929
        %v1931 = vpop.f32.mrb[0].mxu0
        %v1932 = vadd.f32 %v1831, %v1931
        %v1933 = vpop.f32.mrb[0].mxu0
        %v1934 = vadd.f32 %v1833, %v1933
        %1935 = vmatprep.mubr.bf16.mxu0 %v1357
        %1936 = vmatmul.mubr.bf16.gmra.mrb[0].mxu0 %v1356
        %v1937 = vpop.f32.mrb[0].mxu0
        %v1938 = vadd.f32 %v1837, %v1937
        %v1939 = vpop.f32.mrb[0].mxu0
        %v1940 = vadd.f32 %v1839, %v1939
        %v1941 = vpop.f32.mrb[0].mxu0
        %v1942 = vadd.f32 %v1841, %v1941
        %v1943 = vpop.f32.mrb[0].mxu0
        %v1944 = vadd.f32 %v1843, %v1943
        %1945 = vmatprep.mubr.bf16.mxu0 %v1361
        %1946 = vmatmul.mubr.bf16.gmra.mrb[0].mxu0 %v1360
        %v1947 = vpop.f32.mrb[0].mxu0
        %v1948 = vadd.f32 %v1847, %v1947
        %v1949 = vpop.f32.mrb[0].mxu0
        %v1950 = vadd.f32 %v1849, %v1949
        %v1951 = vpop.f32.mrb[0].mxu0
        %v1952 = vadd.f32 %v1851, %v1951
        %v1953 = vpop.f32.mrb[0].mxu0
        %v1954 = vadd.f32 %v1853, %v1953
        %1955 = vmatprep.mubr.bf16.mxu0 %v1365
        %1956 = vmatmul.mubr.bf16.gmra.mrb[0].mxu0 %v1364
        %v1957 = vpop.f32.mrb[0].mxu0
        %v1958 = vadd.f32 %v1857, %v1957
        %v1959 = vpop.f32.mrb[0].mxu0
        %v1960 = vadd.f32 %v1859, %v1959
        %v1961 = vpop.f32.mrb[0].mxu0
        %v1962 = vpop.f32.mrb[0].mxu0
        %1963 = vdwg.mxu0
        %v1964 = vmax.f32 %v1898, 0.0
        %v1965 = vmax.f32 %v1900, 0.0
        %v1966 = vmax.f32 %v1902, 0.0
        %v1967 = vmax.f32 %v1904, 0.0
        %v1968 = vmax.f32 %v1908, 0.0
        %v1969 = vmax.f32 %v1910, 0.0
        %v1970 = vmax.f32 %v1912, 0.0
        %v1971 = vmax.f32 %v1914, 0.0
        %v1972 = vmax.f32 %v1918, 0.0
        %v1973 = vmax.f32 %v1920, 0.0
        %v1974 = vmax.f32 %v1922, 0.0
        %v1975 = vmax.f32 %v1924, 0.0
        %v1976 = vmax.f32 %v1928, 0.0
        %v1977 = vmax.f32 %v1930, 0.0
        %v1978 = vmax.f32 %v1932, 0.0
        %v1979 = vmax.f32 %v1934, 0.0
        %v1980 = vmax.f32 %v1938, 0.0
        %v1981 = vmax.f32 %v1940, 0.0
        %v1982 = vmax.f32 %v1942, 0.0
        %v1983 = vmax.f32 %v1944, 0.0
        %v1984 = vmax.f32 %v1948, 0.0
        %v1985 = vmax.f32 %v1950, 0.0
        %v1986 = vmax.f32 %v1952, 0.0
        %v1987 = vmax.f32 %v1954, 0.0
        %v1988 = vmax.f32 %v1958, 0.0
        %v1989 = vmax.f32 %v1960, 0.0
        %v1990 = vpack.c.bf16 %v1966, %v1964
        %v1991 = vpack.c.bf16 %v1967, %v1965
        %v1992 = vpack.c.bf16 %v1970, %v1968
        %v1993 = vpack.c.bf16 %v1971, %v1969
        %v1994 = vpack.c.bf16 %v1974, %v1972
        %v1995 = vpack.c.bf16 %v1975, %v1973
        %v1996 = vpack.c.bf16 %v1978, %v1976
        %v1997 = vpack.c.bf16 %v1979, %v1977
        %v1998 = vpack.c.bf16 %v1982, %v1980
        %v1999 = vpack.c.bf16 %v1983, %v1981
        %v2000 = vpack.c.bf16 %v1986, %v1984
        %v2001 = vpack.c.bf16 %v1987, %v1985
        %v2002 = vpack.c.bf16 %v1988, %v1988
        %v2003 = vpack.c.bf16 %v1989, %v1989
        %v2004 = vld [vmem:[%s7] sm:$0xf]
        %v2005 = vld [vmem:[%s7 + $0x4] sm:$0xf]
        %v2006 = vld [vmem:[%s7 + $0x8] sm:$0xf]
        %v2007 = vld [vmem:[%s7 + $0xc] sm:$0xf]
        %v2008 = vld [vmem:[%s7 + $0x10] sm:$0xf]
        %v2009 = vld [vmem:[%s7 + $0x14] sm:$0xf]
        %v2010 = vld [vmem:[%s7 + $0x18] sm:$0xf]
        %v2011 = vld [vmem:[%s7 + $0x1c] sm:$0xf]
        %v2012 = vld [vmem:[%s7 + $0x20] sm:$0xf]
        %v2013 = vld [vmem:[%s7 + $0x24] sm:$0xf]
        %v2014 = vld [vmem:[%s7 + $0x28] sm:$0xf]
        %v2015 = vld [vmem:[%s7 + $0x2c] sm:$0xf]
        %v2016 = vld [vmem:[%s7 + $0x30] sm:$0xf]
        %v2017 = vld [vmem:[%s7 + $0x34] sm:$0xf]
        %v2018 = vld [vmem:[%s7 + $0x38] sm:$0xf]
        %v2019 = vld [vmem:[%s7 + $0x3c] sm:$0xf]
        %v2020 = vld [vmem:[%s7 + $0x40] sm:$0xf]
        %v2021 = vld [vmem:[%s7 + $0x44] sm:$0xf]
        %v2022 = vld [vmem:[%s7 + $0x48] sm:$0xf]
        %v2023 = vld [vmem:[%s7 + $0x4c] sm:$0xf]
        %v2024 = vld [vmem:[%s7 + $0x50] sm:$0xf]
        %v2025 = vld [vmem:[%s7 + $0x54] sm:$0xf]
        %v2026 = vld [vmem:[%s7 + $0x58] sm:$0xf]
        %v2027 = vld [vmem:[%s7 + $0x5c] sm:$0xf]
        %v2028 = vld [vmem:[%s7 + $0x60] sm:$0xf]
        %v2029 = vld [vmem:[%s7 + $0x64] sm:$0xf]
        %v2030 = vld [vmem:[%s7 + $0x68] sm:$0xf]
        %v2031 = vld [vmem:[%s7 + $0x6c] sm:$0xf]
        %v2032 = vld [vmem:[%s7 + $0x70] sm:$0xf]
        %v2033 = vld [vmem:[%s7 + $0x74] sm:$0xf]
        %v2034 = vld [vmem:[%s7 + $0x78] sm:$0xf]
        %v2035 = vld [vmem:[%s7 + $0x7c] sm:$0xf]
        %v2036 = vld [vmem:[%s8] sm:$0x1]
        %v2038 = vlaneseq
        %v2039 = vshrl.u32 %v2038, 7
        %v2040 = vsub.s32 0, %v2039
        %v2041 = vrot.slane %v2036, %v2040
        %v2075 = vunpack.c.l.b16 %v2004
        %v2076 = vunpack.c.l.b16 %v2005
        %v2077 = vunpack.c.l.b16 %v2006
        %v2078 = vunpack.c.l.b16 %v2007
        %v2079 = vunpack.c.l.b16 %v2008
        %v2080 = vunpack.c.l.b16 %v2009
        %v2081 = vunpack.c.l.b16 %v2010
        %v2082 = vunpack.c.l.b16 %v2011
        %v2083 = vunpack.c.l.b16 %v2012
        %v2084 = vunpack.c.l.b16 %v2013
        %v2085 = vunpack.c.l.b16 %v2014
        %v2086 = vunpack.c.l.b16 %v2015
        %v2087 = vunpack.c.l.b16 %v2016
        %v2088 = vunpack.c.l.b16 %v2017
        %v2089 = vunpack.c.l.b16 %v2018
        %v2090 = vunpack.c.l.b16 %v2019
        %v2091 = vunpack.c.l.b16 %v2020
        %v2092 = vunpack.c.l.b16 %v2021
        %v2093 = vunpack.c.l.b16 %v2022
        %v2094 = vunpack.c.l.b16 %v2023
        %v2095 = vunpack.c.l.b16 %v2024
        %v2096 = vunpack.c.l.b16 %v2025
        %v2097 = vunpack.c.l.b16 %v2026
        %v2098 = vunpack.c.l.b16 %v2027
        %v2099 = vunpack.c.l.b16 %v2028
        %v2100 = vunpack.c.l.b16 %v2029
        %v2101 = vunpack.c.l.b16 %v2030
        %v2102 = vunpack.c.l.b16 %v2031
        %v2103 = vunpack.c.l.b16 %v2032
        %v2104 = vunpack.c.l.b16 %v2033
        %v2105 = vunpack.c.l.b16 %v2034
        %v2106 = vunpack.c.l.b16 %v2035
        %v2107 = vpack.c.b16 %v2076, %v2075
        %v2108 = vpack.c.b16 %v2078, %v2077
        %v2109 = vpack.c.b16 %v2080, %v2079
        %v2110 = vpack.c.b16 %v2082, %v2081
        %v2111 = vpack.c.b16 %v2084, %v2083
        %v2112 = vpack.c.b16 %v2086, %v2085
        %v2113 = vpack.c.b16 %v2088, %v2087
        %v2114 = vpack.c.b16 %v2090, %v2089
        %v2115 = vpack.c.b16 %v2092, %v2091
        %v2116 = vpack.c.b16 %v2094, %v2093
        %v2117 = vpack.c.b16 %v2096, %v2095
        %v2118 = vpack.c.b16 %v2098, %v2097
        %v2119 = vpack.c.b16 %v2100, %v2099
        %v2120 = vpack.c.b16 %v2102, %v2101
        %v2121 = vpack.c.b16 %v2104, %v2103
        %v2122 = vpack.c.b16 %v2106, %v2105
        %2139 = vmatprep.subr.bf16.mxu0 0
        %2140 = vmatpush1.bf16.msra.mxu0 %v2107
        %2141 = vmatprep.subr.bf16.mxu0 0
        %2142 = vmatpush1.bf16.msra.mxu0 %v2108
        %2143 = vmatprep.subr.bf16.mxu0 0
        %2144 = vmatpush1.bf16.msra.mxu0 %v2109
        %2145 = vmatprep.subr.bf16.mxu0 0
        %2146 = vmatpush1.bf16.msra.mxu0 %v2110
        %2147 = vmatprep.subr.bf16.mxu0 0
        %2148 = vmatpush1.bf16.msra.mxu0 %v2111
        %2149 = vmatprep.subr.bf16.mxu0 0
        %2150 = vmatpush1.bf16.msra.mxu0 %v2112
        %2151 = vmatprep.subr.bf16.mxu0 0
        %2152 = vmatpush1.bf16.msra.mxu0 %v2113
        %2153 = vmatprep.subr.bf16.mxu0 0
        %2154 = vmatpush1.bf16.msra.mxu0 %v2114
        %2155 = vmatprep.subr.bf16.mxu0 0
        %2156 = vmatpush1.bf16.msra.mxu0 %v2115
        %2157 = vmatprep.subr.bf16.mxu0 0
        %2158 = vmatpush1.bf16.msra.mxu0 %v2116
        %2159 = vmatprep.subr.bf16.mxu0 0
        %2160 = vmatpush1.bf16.msra.mxu0 %v2117
        %2161 = vmatprep.subr.bf16.mxu0 0
        %2162 = vmatpush1.bf16.msra.mxu0 %v2118
        %2163 = vmatprep.subr.bf16.mxu0 0
        %2164 = vmatpush1.bf16.msra.mxu0 %v2119
        %2165 = vmatprep.subr.bf16.mxu0 0
        %2166 = vmatpush1.bf16.msra.mxu0 %v2120
        %2167 = vmatprep.subr.bf16.mxu0 0
        %2168 = vmatpush1.bf16.msra.mxu0 %v2121
        %2169 = vmatprep.subr.bf16.mxu0 0
        %2170 = vmatpush1.bf16.msra.mxu0 %v2122
        %2171 = vmatprep.mubr.bf16.mxu0 %v1991
        %2172 = vmatmul.mubr.bf16.gmra.mrb[0].mxu0 %v1990
        %v2173 = vpop.f32.mrb[0].mxu0
        %v2174 = vadd.f32 %v2041, %v2173
        %v2175 = vpop.f32.mrb[0].mxu0
        %v2176 = vpop.f32.mrb[0].mxu0
        %v2177 = vadd.f32 %v2041, %v2176
        %v2178 = vpop.f32.mrb[0].mxu0
        %2179 = vmatprep.mubr.bf16.mxu0 %v1993
        %2180 = vmatmul.mubr.bf16.gmra.mrb[0].mxu0 %v1992
        %v2181 = vpop.f32.mrb[0].mxu0
        %v2182 = vadd.f32 %v2041, %v2181
        %v2183 = vpop.f32.mrb[0].mxu0
        %v2184 = vpop.f32.mrb[0].mxu0
        %v2185 = vadd.f32 %v2041, %v2184
        %v2186 = vpop.f32.mrb[0].mxu0
        %2187 = vmatprep.mubr.bf16.mxu0 %v1995
        %2188 = vmatmul.mubr.bf16.gmra.mrb[0].mxu0 %v1994
        %v2189 = vpop.f32.mrb[0].mxu0
        %v2190 = vadd.f32 %v2041, %v2189
        %v2191 = vpop.f32.mrb[0].mxu0
        %v2192 = vpop.f32.mrb[0].mxu0
        %v2193 = vadd.f32 %v2041, %v2192
        %v2194 = vpop.f32.mrb[0].mxu0
        %2195 = vmatprep.mubr.bf16.mxu0 %v1997
        %2196 = vmatmul.mubr.bf16.gmra.mrb[0].mxu0 %v1996
        %v2197 = vpop.f32.mrb[0].mxu0
        %v2198 = vadd.f32 %v2041, %v2197
        %v2199 = vpop.f32.mrb[0].mxu0
        %v2200 = vpop.f32.mrb[0].mxu0
        %v2201 = vadd.f32 %v2041, %v2200
        %v2202 = vpop.f32.mrb[0].mxu0
        %2203 = vmatprep.mubr.bf16.mxu0 %v1999
        %2204 = vmatmul.mubr.bf16.gmra.mrb[0].mxu0 %v1998
        %v2205 = vpop.f32.mrb[0].mxu0
        %v2206 = vadd.f32 %v2041, %v2205
        %v2207 = vpop.f32.mrb[0].mxu0
        %v2208 = vpop.f32.mrb[0].mxu0
        %v2209 = vadd.f32 %v2041, %v2208
        %v2210 = vpop.f32.mrb[0].mxu0
        %2211 = vmatprep.mubr.bf16.mxu0 %v2001
        %2212 = vmatmul.mubr.bf16.gmra.mrb[0].mxu0 %v2000
        %v2213 = vpop.f32.mrb[0].mxu0
        %v2214 = vadd.f32 %v2041, %v2213
        %v2215 = vpop.f32.mrb[0].mxu0
        %v2216 = vpop.f32.mrb[0].mxu0
        %v2217 = vadd.f32 %v2041, %v2216
        %v2218 = vpop.f32.mrb[0].mxu0
        %2219 = vmatprep.mubr.bf16.mxu0 %v2003
        %2220 = vmatmul.mubr.bf16.gmra.mrb[0].mxu0 %v2002
        %v2221 = vpop.f32.mrb[0].mxu0
        %v2222 = vadd.f32 %v2041, %v2221
        %v2223 = vpop.f32.mrb[0].mxu0
        %v2224 = vpop.f32.mrb[0].mxu0
        %v2225 = vpop.f32.mrb[0].mxu0
        %2226 = vdwg.mxu0
        %v2227 = vmax.f32 %v2174, -60.0
        %v2228 = vmax.f32 %v2177, -60.0
        %v2229 = vmax.f32 %v2182, -60.0
        %v2230 = vmax.f32 %v2185, -60.0
        %v2231 = vmax.f32 %v2190, -60.0
        %v2232 = vmax.f32 %v2193, -60.0
        %v2233 = vmax.f32 %v2198, -60.0
        %v2234 = vmax.f32 %v2201, -60.0
        %v2235 = vmax.f32 %v2206, -60.0
        %v2236 = vmax.f32 %v2209, -60.0
        %v2237 = vmax.f32 %v2214, -60.0
        %v2238 = vmax.f32 %v2217, -60.0
        %v2239 = vmax.f32 %v2222, -60.0
        %v2240 = vsub.f32 0.0, %v2227
        %v2241 = vsub.f32 0.0, %v2228
        %v2242 = vsub.f32 0.0, %v2229
        %v2243 = vsub.f32 0.0, %v2230
        %v2244 = vsub.f32 0.0, %v2231
        %v2245 = vsub.f32 0.0, %v2232
        %v2246 = vsub.f32 0.0, %v2233
        %v2247 = vsub.f32 0.0, %v2234
        %v2248 = vsub.f32 0.0, %v2235
        %v2249 = vsub.f32 0.0, %v2236
        %v2250 = vsub.f32 0.0, %v2237
        %v2251 = vsub.f32 0.0, %v2238
        %v2252 = vsub.f32 0.0, %v2239
        %v2253 = vmul.f32 %v2240, 1.442695
        %v2254 = vpow.pop %v2253
        %v2255 = vmul.f32 %v2241, 1.442695
        %v2256 = vpow.pop %v2255
        %v2257 = vmul.f32 %v2242, 1.442695
        %v2258 = vpow.pop %v2257
        %v2259 = vmul.f32 %v2243, 1.442695
        %v2260 = vpow.pop %v2259
        %v2261 = vmul.f32 %v2244, 1.442695
        %v2262 = vpow.pop %v2261
        %v2263 = vmul.f32 %v2245, 1.442695
        %v2264 = vpow.pop %v2263
        %v2265 = vmul.f32 %v2246, 1.442695
        %v2266 = vpow.pop %v2265
        %v2267 = vmul.f32 %v2247, 1.442695
        %v2268 = vpow.pop %v2267
        %v2269 = vmul.f32 %v2248, 1.442695
        %v2270 = vpow.pop %v2269
        %v2271 = vmul.f32 %v2249, 1.442695
        %v2272 = vpow.pop %v2271
        %v2273 = vmul.f32 %v2250, 1.442695
        %v2274 = vpow.pop %v2273
        %v2275 = vmul.f32 %v2251, 1.442695
        %v2276 = vpow.pop %v2275
        %v2277 = vmul.f32 %v2252, 1.442695
        %v2278 = vpow.pop %v2277
        %v2279 = vadd.f32 %v2254, 1.0
        %v2280 = vadd.f32 %v2256, 1.0
        %v2281 = vadd.f32 %v2258, 1.0
        %v2282 = vadd.f32 %v2260, 1.0
        %v2283 = vadd.f32 %v2262, 1.0
        %v2284 = vadd.f32 %v2264, 1.0
        %v2285 = vadd.f32 %v2266, 1.0
        %v2286 = vadd.f32 %v2268, 1.0
        %v2287 = vadd.f32 %v2270, 1.0
        %v2288 = vadd.f32 %v2272, 1.0
        %v2289 = vadd.f32 %v2274, 1.0
        %v2290 = vadd.f32 %v2276, 1.0
        %v2291 = vadd.f32 %v2278, 1.0
        %v2292 = vrcp.pop %v2279
        %v2293 = vrcp.pop %v2280
        %v2294 = vrcp.pop %v2281
        %v2295 = vrcp.pop %v2282
        %v2296 = vrcp.pop %v2283
        %v2297 = vrcp.pop %v2284
        %v2298 = vrcp.pop %v2285
        %v2299 = vrcp.pop %v2286
        %v2300 = vrcp.pop %v2287
        %v2301 = vrcp.pop %v2288
        %v2302 = vrcp.pop %v2289
        %v2303 = vrcp.pop %v2290
        %v2304 = vrcp.pop %v2291
        %v2305 = vmul.f32 %v2279, %v2292
        %v2306 = vmul.f32 %v2280, %v2293
        %v2307 = vmul.f32 %v2281, %v2294
        %v2308 = vmul.f32 %v2282, %v2295
        %v2309 = vmul.f32 %v2283, %v2296
        %v2310 = vmul.f32 %v2284, %v2297
        %v2311 = vmul.f32 %v2285, %v2298
        %v2312 = vmul.f32 %v2286, %v2299
        %v2313 = vmul.f32 %v2287, %v2300
        %v2314 = vmul.f32 %v2288, %v2301
        %v2315 = vmul.f32 %v2289, %v2302
        %v2316 = vmul.f32 %v2290, %v2303
        %v2317 = vmul.f32 %v2291, %v2304
        %v2318 = vsub.f32 2.0, %v2305
        %v2319 = vsub.f32 2.0, %v2306
        %v2320 = vsub.f32 2.0, %v2307
        %v2321 = vsub.f32 2.0, %v2308
        %v2322 = vsub.f32 2.0, %v2309
        %v2323 = vsub.f32 2.0, %v2310
        %v2324 = vsub.f32 2.0, %v2311
        %v2325 = vsub.f32 2.0, %v2312
        %v2326 = vsub.f32 2.0, %v2313
        %v2327 = vsub.f32 2.0, %v2314
        %v2328 = vsub.f32 2.0, %v2315
        %v2329 = vsub.f32 2.0, %v2316
        %v2330 = vsub.f32 2.0, %v2317
        %v2331 = vmul.f32 %v2292, %v2318
        %v2332 = vmul.f32 %v2293, %v2319
        %v2333 = vmul.f32 %v2294, %v2320
        %v2334 = vmul.f32 %v2295, %v2321
        %v2335 = vmul.f32 %v2296, %v2322
        %v2336 = vmul.f32 %v2297, %v2323
        %v2337 = vmul.f32 %v2298, %v2324
        %v2338 = vmul.f32 %v2299, %v2325
        %v2339 = vmul.f32 %v2300, %v2326
        %v2340 = vmul.f32 %v2301, %v2327
        %v2341 = vmul.f32 %v2302, %v2328
        %v2342 = vmul.f32 %v2303, %v2329
        %v2343 = vmul.f32 %v2304, %v2330
        %v2344 = vand.u32 2147483647, %v2174
        %v2345 = vand.u32 2147483647, %v2177
        %v2346 = vand.u32 2147483647, %v2182
        %v2347 = vand.u32 2147483647, %v2185
        %v2348 = vand.u32 2147483647, %v2190
        %v2349 = vand.u32 2147483647, %v2193
        %v2350 = vand.u32 2147483647, %v2198
        %v2351 = vand.u32 2147483647, %v2201
        %v2352 = vand.u32 2147483647, %v2206
        %v2353 = vand.u32 2147483647, %v2209
        %v2354 = vand.u32 2147483647, %v2214
        %v2355 = vand.u32 2147483647, %v2217
        %v2356 = vand.u32 2147483647, %v2222
        %v2357 = vlaneseq
        %v2358 = vand.u32 %v2357, 127
        %vm2359 = vcmp.gt.s32.totalorder %v2358, 0
        %2361 = vset.pattern.permute.xlu0 1
        %2362 = vperm.xlu0 %2361, %v2344
        %v2363 = vpop.permute.xlu0 %2362
        %2366 = vset.pattern.permute.xlu0 1
        %2367 = vperm.xlu0 %2366, %v2345
        %v2368 = vpop.permute.xlu0 %2367
        %2371 = vset.pattern.permute.xlu0 1
        %2372 = vperm.xlu0 %2371, %v2346
        %v2373 = vpop.permute.xlu0 %2372
        %2376 = vset.pattern.permute.xlu0 1
        %2377 = vperm.xlu0 %2376, %v2347
        %v2378 = vpop.permute.xlu0 %2377
        %2381 = vset.pattern.permute.xlu0 1
        %2382 = vperm.xlu0 %2381, %v2348
        %v2383 = vpop.permute.xlu0 %2382
        %2386 = vset.pattern.permute.xlu0 1
        %2387 = vperm.xlu0 %2386, %v2349
        %v2388 = vpop.permute.xlu0 %2387
        %2391 = vset.pattern.permute.xlu0 1
        %2392 = vperm.xlu0 %2391, %v2350
        %v2393 = vpop.permute.xlu0 %2392
        %2396 = vset.pattern.permute.xlu0 1
        %2397 = vperm.xlu0 %2396, %v2351
        %v2398 = vpop.permute.xlu0 %2397
        %2401 = vset.pattern.permute.xlu0 1
        %2402 = vperm.xlu0 %2401, %v2352
        %v2403 = vpop.permute.xlu0 %2402
        %2406 = vset.pattern.permute.xlu0 1
        %2407 = vperm.xlu0 %2406, %v2353
        %v2408 = vpop.permute.xlu0 %2407
        %2411 = vset.pattern.permute.xlu0 1
        %2412 = vperm.xlu0 %2411, %v2354
        %v2413 = vpop.permute.xlu0 %2412
        %2416 = vset.pattern.permute.xlu0 1
        %2417 = vperm.xlu0 %2416, %v2355
        %v2418 = vpop.permute.xlu0 %2417
        %2421 = vset.pattern.permute.xlu0 1
        %2422 = vperm.xlu0 %2421, %v2356
        %v2423 = vpop.permute.xlu0 %2422
        %v2425 = vsel %vm2359, %v2363, 0.0
        %v2426 = vsel %vm2359, %v2368, 0.0
        %v2427 = vsel %vm2359, %v2373, 0.0
        %v2428 = vsel %vm2359, %v2378, 0.0
        %v2429 = vsel %vm2359, %v2383, 0.0
        %v2430 = vsel %vm2359, %v2388, 0.0
        %v2431 = vsel %vm2359, %v2393, 0.0
        %v2432 = vsel %vm2359, %v2398, 0.0
        %v2433 = vsel %vm2359, %v2403, 0.0
        %v2434 = vsel %vm2359, %v2408, 0.0
        %v2435 = vsel %vm2359, %v2413, 0.0
        %v2436 = vsel %vm2359, %v2418, 0.0
        %v2437 = vsel %vm2359, %v2423, 0.0
        %v2438 = vadd.f32 %v2425, 0.0
        %v2439 = vadd.f32 %v2426, 0.0
        %v2440 = vadd.f32 %v2427, 0.0
        %v2441 = vadd.f32 %v2428, 0.0
        %v2442 = vadd.f32 %v2429, 0.0
        %v2443 = vadd.f32 %v2430, 0.0
        %v2444 = vadd.f32 %v2431, 0.0
        %v2445 = vadd.f32 %v2432, 0.0
        %v2446 = vadd.f32 %v2433, 0.0
        %v2447 = vadd.f32 %v2434, 0.0
        %v2448 = vadd.f32 %v2435, 0.0
        %v2449 = vadd.f32 %v2436, 0.0
        %v2450 = vadd.f32 %v2437, 0.0
        %vm2451 = vcmp.gt.s32.totalorder %v2358, 1
        %2452 = vset.pattern.permute.xlu0 2
        %2453 = vperm.xlu0 %2452, %v2344
        %v2454 = vpop.permute.xlu0 %2453
        %2456 = vset.pattern.permute.xlu0 2
        %2457 = vperm.xlu0 %2456, %v2345
        %v2458 = vpop.permute.xlu0 %2457
        %2460 = vset.pattern.permute.xlu0 2
        %2461 = vperm.xlu0 %2460, %v2346
        %v2462 = vpop.permute.xlu0 %2461
        %2464 = vset.pattern.permute.xlu0 2
        %2465 = vperm.xlu0 %2464, %v2347
        %v2466 = vpop.permute.xlu0 %2465
        %2468 = vset.pattern.permute.xlu0 2
        %2469 = vperm.xlu0 %2468, %v2348
        %v2470 = vpop.permute.xlu0 %2469
        %2472 = vset.pattern.permute.xlu0 2
        %2473 = vperm.xlu0 %2472, %v2349
        %v2474 = vpop.permute.xlu0 %2473
        %2476 = vset.pattern.permute.xlu0 2
        %2477 = vperm.xlu0 %2476, %v2350
        %v2478 = vpop.permute.xlu0 %2477
        %2480 = vset.pattern.permute.xlu0 2
        %2481 = vperm.xlu0 %2480, %v2351
        %v2482 = vpop.permute.xlu0 %2481
        %2484 = vset.pattern.permute.xlu0 2
        %2485 = vperm.xlu0 %2484, %v2352
        %v2486 = vpop.permute.xlu0 %2485
        %2488 = vset.pattern.permute.xlu0 2
        %2489 = vperm.xlu0 %2488, %v2353
        %v2490 = vpop.permute.xlu0 %2489
        %2492 = vset.pattern.permute.xlu0 2
        %2493 = vperm.xlu0 %2492, %v2354
        %v2494 = vpop.permute.xlu0 %2493
        %2496 = vset.pattern.permute.xlu0 2
        %2497 = vperm.xlu0 %2496, %v2355
        %v2498 = vpop.permute.xlu0 %2497
        %2500 = vset.pattern.permute.xlu0 2
        %2501 = vperm.xlu0 %2500, %v2356
        %v2502 = vpop.permute.xlu0 %2501
        %v2504 = vsel %vm2451, %v2454, 0.0
        %v2505 = vsel %vm2451, %v2458, 0.0
        %v2506 = vsel %vm2451, %v2462, 0.0
        %v2507 = vsel %vm2451, %v2466, 0.0
        %v2508 = vsel %vm2451, %v2470, 0.0
        %v2509 = vsel %vm2451, %v2474, 0.0
        %v2510 = vsel %vm2451, %v2478, 0.0
        %v2511 = vsel %vm2451, %v2482, 0.0
        %v2512 = vsel %vm2451, %v2486, 0.0
        %v2513 = vsel %vm2451, %v2490, 0.0
        %v2514 = vsel %vm2451, %v2494, 0.0
        %v2515 = vsel %vm2451, %v2498, 0.0
        %v2516 = vsel %vm2451, %v2502, 0.0
        %v2517 = vadd.f32 %v2438, %v2504
        %v2518 = vadd.f32 %v2439, %v2505
        %v2519 = vadd.f32 %v2440, %v2506
        %v2520 = vadd.f32 %v2441, %v2507
        %v2521 = vadd.f32 %v2442, %v2508
        %v2522 = vadd.f32 %v2443, %v2509
        %v2523 = vadd.f32 %v2444, %v2510
        %v2524 = vadd.f32 %v2445, %v2511
        %v2525 = vadd.f32 %v2446, %v2512
        %v2526 = vadd.f32 %v2447, %v2513
        %v2527 = vadd.f32 %v2448, %v2514
        %v2528 = vadd.f32 %v2449, %v2515
        %v2529 = vadd.f32 %v2450, %v2516
        %vm2530 = vcmp.gt.s32.totalorder %v2358, 2
        %2531 = vset.pattern.permute.xlu0 3
        %2532 = vperm.xlu0 %2531, %v2344
        %v2533 = vpop.permute.xlu0 %2532
        %2535 = vset.pattern.permute.xlu0 3
        %2536 = vperm.xlu0 %2535, %v2345
        %v2537 = vpop.permute.xlu0 %2536
        %2539 = vset.pattern.permute.xlu0 3
        %2540 = vperm.xlu0 %2539, %v2346
        %v2541 = vpop.permute.xlu0 %2540
        %2543 = vset.pattern.permute.xlu0 3
        %2544 = vperm.xlu0 %2543, %v2347
        %v2545 = vpop.permute.xlu0 %2544
        %2547 = vset.pattern.permute.xlu0 3
        %2548 = vperm.xlu0 %2547, %v2348
        %v2549 = vpop.permute.xlu0 %2548
        %2551 = vset.pattern.permute.xlu0 3
        %2552 = vperm.xlu0 %2551, %v2349
        %v2553 = vpop.permute.xlu0 %2552
        %2555 = vset.pattern.permute.xlu0 3
        %2556 = vperm.xlu0 %2555, %v2350
        %v2557 = vpop.permute.xlu0 %2556
        %2559 = vset.pattern.permute.xlu0 3
        %2560 = vperm.xlu0 %2559, %v2351
        %v2561 = vpop.permute.xlu0 %2560
        %2563 = vset.pattern.permute.xlu0 3
        %2564 = vperm.xlu0 %2563, %v2352
        %v2565 = vpop.permute.xlu0 %2564
        %2567 = vset.pattern.permute.xlu0 3
        %2568 = vperm.xlu0 %2567, %v2353
        %v2569 = vpop.permute.xlu0 %2568
        %2571 = vset.pattern.permute.xlu0 3
        %2572 = vperm.xlu0 %2571, %v2354
        %v2573 = vpop.permute.xlu0 %2572
        %2575 = vset.pattern.permute.xlu0 3
        %2576 = vperm.xlu0 %2575, %v2355
        %v2577 = vpop.permute.xlu0 %2576
        %2579 = vset.pattern.permute.xlu0 3
        %2580 = vperm.xlu0 %2579, %v2356
        %v2581 = vpop.permute.xlu0 %2580
        %v2583 = vsel %vm2530, %v2533, 0.0
        %v2584 = vsel %vm2530, %v2537, 0.0
        %v2585 = vsel %vm2530, %v2541, 0.0
        %v2586 = vsel %vm2530, %v2545, 0.0
        %v2587 = vsel %vm2530, %v2549, 0.0
        %v2588 = vsel %vm2530, %v2553, 0.0
        %v2589 = vsel %vm2530, %v2557, 0.0
        %v2590 = vsel %vm2530, %v2561, 0.0
        %v2591 = vsel %vm2530, %v2565, 0.0
        %v2592 = vsel %vm2530, %v2569, 0.0
        %v2593 = vsel %vm2530, %v2573, 0.0
        %v2594 = vsel %vm2530, %v2577, 0.0
        %v2595 = vsel %vm2530, %v2581, 0.0
        %v2596 = vadd.f32 %v2517, %v2583
        %v2597 = vadd.f32 %v2518, %v2584
        %v2598 = vadd.f32 %v2519, %v2585
        %v2599 = vadd.f32 %v2520, %v2586
        %v2600 = vadd.f32 %v2521, %v2587
        %v2601 = vadd.f32 %v2522, %v2588
        %v2602 = vadd.f32 %v2523, %v2589
        %v2603 = vadd.f32 %v2524, %v2590
        %v2604 = vadd.f32 %v2525, %v2591
        %v2605 = vadd.f32 %v2526, %v2592
        %v2606 = vadd.f32 %v2527, %v2593
        %v2607 = vadd.f32 %v2528, %v2594
        %v2608 = vadd.f32 %v2529, %v2595
        %2610 = vset.pattern.permute.xlu0 0
        %2611 = vperm.xlu0 %2610, %v2331
        %v2612 = vpop.permute.xlu0 %2611
        %2615 = vset.pattern.permute.xlu0 0
        %2616 = vperm.xlu0 %2615, %v2332
        %v2617 = vpop.permute.xlu0 %2616
        %2620 = vset.pattern.permute.xlu0 0
        %2621 = vperm.xlu0 %2620, %v2333
        %v2622 = vpop.permute.xlu0 %2621
        %2625 = vset.pattern.permute.xlu0 0
        %2626 = vperm.xlu0 %2625, %v2334
        %v2627 = vpop.permute.xlu0 %2626
        %2630 = vset.pattern.permute.xlu0 0
        %2631 = vperm.xlu0 %2630, %v2335
        %v2632 = vpop.permute.xlu0 %2631
        %2635 = vset.pattern.permute.xlu0 0
        %2636 = vperm.xlu0 %2635, %v2336
        %v2637 = vpop.permute.xlu0 %2636
        %2640 = vset.pattern.permute.xlu0 0
        %2641 = vperm.xlu0 %2640, %v2337
        %v2642 = vpop.permute.xlu0 %2641
        %2645 = vset.pattern.permute.xlu0 0
        %2646 = vperm.xlu0 %2645, %v2338
        %v2647 = vpop.permute.xlu0 %2646
        %2650 = vset.pattern.permute.xlu0 0
        %2651 = vperm.xlu0 %2650, %v2339
        %v2652 = vpop.permute.xlu0 %2651
        %2655 = vset.pattern.permute.xlu0 0
        %2656 = vperm.xlu0 %2655, %v2340
        %v2657 = vpop.permute.xlu0 %2656
        %2660 = vset.pattern.permute.xlu0 0
        %2661 = vperm.xlu0 %2660, %v2341
        %v2662 = vpop.permute.xlu0 %2661
        %2665 = vset.pattern.permute.xlu0 0
        %2666 = vperm.xlu0 %2665, %v2342
        %v2667 = vpop.permute.xlu0 %2666
        %2670 = vset.pattern.permute.xlu0 0
        %2671 = vperm.xlu0 %2670, %v2343
        %v2672 = vpop.permute.xlu0 %2671
        %v2674 = vmax.f32 %v2596, -60.0
        %v2675 = vmax.f32 %v2597, -60.0
        %v2676 = vmax.f32 %v2598, -60.0
        %v2677 = vmax.f32 %v2599, -60.0
        %v2678 = vmax.f32 %v2600, -60.0
        %v2679 = vmax.f32 %v2601, -60.0
        %v2680 = vmax.f32 %v2602, -60.0
        %v2681 = vmax.f32 %v2603, -60.0
        %v2682 = vmax.f32 %v2604, -60.0
        %v2683 = vmax.f32 %v2605, -60.0
        %v2684 = vmax.f32 %v2606, -60.0
        %v2685 = vmax.f32 %v2607, -60.0
        %v2686 = vmax.f32 %v2608, -60.0
        %v2687 = vsub.f32 0.0, %v2674
        %v2688 = vsub.f32 0.0, %v2675
        %v2689 = vsub.f32 0.0, %v2676
        %v2690 = vsub.f32 0.0, %v2677
        %v2691 = vsub.f32 0.0, %v2678
        %v2692 = vsub.f32 0.0, %v2679
        %v2693 = vsub.f32 0.0, %v2680
        %v2694 = vsub.f32 0.0, %v2681
        %v2695 = vsub.f32 0.0, %v2682
        %v2696 = vsub.f32 0.0, %v2683
        %v2697 = vsub.f32 0.0, %v2684
        %v2698 = vsub.f32 0.0, %v2685
        %v2699 = vsub.f32 0.0, %v2686
        %v2700 = vmul.f32 %v2687, 1.442695
        %v2701 = vpow.pop %v2700
        %v2702 = vmul.f32 %v2688, 1.442695
        %v2703 = vpow.pop %v2702
        %v2704 = vmul.f32 %v2689, 1.442695
        %v2705 = vpow.pop %v2704
        %v2706 = vmul.f32 %v2690, 1.442695
        %v2707 = vpow.pop %v2706
        %v2708 = vmul.f32 %v2691, 1.442695
        %v2709 = vpow.pop %v2708
        %v2710 = vmul.f32 %v2692, 1.442695
        %v2711 = vpow.pop %v2710
        %v2712 = vmul.f32 %v2693, 1.442695
        %v2713 = vpow.pop %v2712
        %v2714 = vmul.f32 %v2694, 1.442695
        %v2715 = vpow.pop %v2714
        %v2716 = vmul.f32 %v2695, 1.442695
        %v2717 = vpow.pop %v2716
        %v2718 = vmul.f32 %v2696, 1.442695
        %v2719 = vpow.pop %v2718
        %v2720 = vmul.f32 %v2697, 1.442695
        %v2721 = vpow.pop %v2720
        %v2722 = vmul.f32 %v2698, 1.442695
        %v2723 = vpow.pop %v2722
        %v2724 = vmul.f32 %v2699, 1.442695
        %v2725 = vpow.pop %v2724
        %v2726 = vadd.f32 %v2701, 1.0
        %v2727 = vadd.f32 %v2703, 1.0
        %v2728 = vadd.f32 %v2705, 1.0
        %v2729 = vadd.f32 %v2707, 1.0
        %v2730 = vadd.f32 %v2709, 1.0
        %v2731 = vadd.f32 %v2711, 1.0
        %v2732 = vadd.f32 %v2713, 1.0
        %v2733 = vadd.f32 %v2715, 1.0
        %v2734 = vadd.f32 %v2717, 1.0
        %v2735 = vadd.f32 %v2719, 1.0
        %v2736 = vadd.f32 %v2721, 1.0
        %v2737 = vadd.f32 %v2723, 1.0
        %v2738 = vadd.f32 %v2725, 1.0
        %v2739 = vrcp.pop %v2726
        %v2740 = vrcp.pop %v2727
        %v2741 = vrcp.pop %v2728
        %v2742 = vrcp.pop %v2729
        %v2743 = vrcp.pop %v2730
        %v2744 = vrcp.pop %v2731
        %v2745 = vrcp.pop %v2732
        %v2746 = vrcp.pop %v2733
        %v2747 = vrcp.pop %v2734
        %v2748 = vrcp.pop %v2735
        %v2749 = vrcp.pop %v2736
        %v2750 = vrcp.pop %v2737
        %v2751 = vrcp.pop %v2738
        %v2752 = vmul.f32 %v2726, %v2739
        %v2753 = vmul.f32 %v2727, %v2740
        %v2754 = vmul.f32 %v2728, %v2741
        %v2755 = vmul.f32 %v2729, %v2742
        %v2756 = vmul.f32 %v2730, %v2743
        %v2757 = vmul.f32 %v2731, %v2744
        %v2758 = vmul.f32 %v2732, %v2745
        %v2759 = vmul.f32 %v2733, %v2746
        %v2760 = vmul.f32 %v2734, %v2747
        %v2761 = vmul.f32 %v2735, %v2748
        %v2762 = vmul.f32 %v2736, %v2749
        %v2763 = vmul.f32 %v2737, %v2750
        %v2764 = vmul.f32 %v2738, %v2751
        %v2765 = vsub.f32 2.0, %v2752
        %v2766 = vsub.f32 2.0, %v2753
        %v2767 = vsub.f32 2.0, %v2754
        %v2768 = vsub.f32 2.0, %v2755
        %v2769 = vsub.f32 2.0, %v2756
        %v2770 = vsub.f32 2.0, %v2757
        %v2771 = vsub.f32 2.0, %v2758
        %v2772 = vsub.f32 2.0, %v2759
        %v2773 = vsub.f32 2.0, %v2760
        %v2774 = vsub.f32 2.0, %v2761
        %v2775 = vsub.f32 2.0, %v2762
        %v2776 = vsub.f32 2.0, %v2763
        %v2777 = vsub.f32 2.0, %v2764
        %v2778 = vmul.f32 %v2739, %v2765
        %v2779 = vmul.f32 %v2740, %v2766
        %v2780 = vmul.f32 %v2741, %v2767
        %v2781 = vmul.f32 %v2742, %v2768
        %v2782 = vmul.f32 %v2743, %v2769
        %v2783 = vmul.f32 %v2744, %v2770
        %v2784 = vmul.f32 %v2745, %v2771
        %v2785 = vmul.f32 %v2746, %v2772
        %v2786 = vmul.f32 %v2747, %v2773
        %v2787 = vmul.f32 %v2748, %v2774
        %v2788 = vmul.f32 %v2749, %v2775
        %v2789 = vmul.f32 %v2750, %v2776
        %v2790 = vmul.f32 %v2751, %v2777
        %v2791 = vsub.f32 1.0, %v2612
        %v2792 = vsub.f32 1.0, %v2617
        %v2793 = vsub.f32 1.0, %v2622
        %v2794 = vsub.f32 1.0, %v2627
        %v2795 = vsub.f32 1.0, %v2632
        %v2796 = vsub.f32 1.0, %v2637
        %v2797 = vsub.f32 1.0, %v2642
        %v2798 = vsub.f32 1.0, %v2647
        %v2799 = vsub.f32 1.0, %v2652
        %v2800 = vsub.f32 1.0, %v2657
        %v2801 = vsub.f32 1.0, %v2662
        %v2802 = vsub.f32 1.0, %v2667
        %v2803 = vsub.f32 1.0, %v2672
        %v2804 = vmul.f32 %v2778, %v2791
        %v2805 = vmul.f32 %v2779, %v2792
        %v2806 = vmul.f32 %v2780, %v2793
        %v2807 = vmul.f32 %v2781, %v2794
        %v2808 = vmul.f32 %v2782, %v2795
        %v2809 = vmul.f32 %v2783, %v2796
        %v2810 = vmul.f32 %v2784, %v2797
        %v2811 = vmul.f32 %v2785, %v2798
        %v2812 = vmul.f32 %v2786, %v2799
        %v2813 = vmul.f32 %v2787, %v2800
        %v2814 = vmul.f32 %v2788, %v2801
        %v2815 = vmul.f32 %v2789, %v2802
        %v2816 = vmul.f32 %v2790, %v2803
        %v2817 = vadd.f32 %v2612, %v2804
        %v2818 = vadd.f32 %v2617, %v2805
        %v2819 = vadd.f32 %v2622, %v2806
        %v2820 = vadd.f32 %v2627, %v2807
        %v2821 = vadd.f32 %v2632, %v2808
        %v2822 = vadd.f32 %v2637, %v2809
        %v2823 = vadd.f32 %v2642, %v2810
        %v2824 = vadd.f32 %v2647, %v2811
        %v2825 = vadd.f32 %v2652, %v2812
        %v2826 = vadd.f32 %v2657, %v2813
        %v2827 = vadd.f32 %v2662, %v2814
        %v2828 = vadd.f32 %v2667, %v2815
        %v2829 = vadd.f32 %v2672, %v2816
        %vm2830 = vcmp.eq.s32.totalorder %v2358, 0
        %v2831 = vsel %vm2830, %v2612, %v2817
        %v2832 = vsel %vm2830, %v2617, %v2818
        %v2833 = vsel %vm2830, %v2622, %v2819
        %v2834 = vsel %vm2830, %v2627, %v2820
        %v2835 = vsel %vm2830, %v2632, %v2821
        %v2836 = vsel %vm2830, %v2637, %v2822
        %v2837 = vsel %vm2830, %v2642, %v2823
        %v2838 = vsel %vm2830, %v2647, %v2824
        %v2839 = vsel %vm2830, %v2652, %v2825
        %v2840 = vsel %vm2830, %v2657, %v2826
        %v2841 = vsel %vm2830, %v2662, %v2827
        %v2842 = vsel %vm2830, %v2667, %v2828
        %v2843 = vsel %vm2830, %v2672, %v2829
        %vm2844 = vcmask 31744
        %2845 = vst.msk [vmem:[%s364] sm:$0xff] %vm2844, %v2831
        %2846 = vst.msk [vmem:[%s364 + $0x8] sm:$0xff] %vm2844, %v2832
        %2847 = vst.msk [vmem:[%s364 + $0x10] sm:$0xff] %vm2844, %v2833
        %2848 = vst.msk [vmem:[%s364 + $0x18] sm:$0xff] %vm2844, %v2834
        %2849 = vst.msk [vmem:[%s364 + $0x20] sm:$0xff] %vm2844, %v2835
        %2850 = vst.msk [vmem:[%s364 + $0x28] sm:$0xff] %vm2844, %v2836
        %2851 = vst.msk [vmem:[%s364 + $0x30] sm:$0xff] %vm2844, %v2837
        %2852 = vst.msk [vmem:[%s364 + $0x38] sm:$0xff] %vm2844, %v2838
        %2853 = vst.msk [vmem:[%s364 + $0x40] sm:$0xff] %vm2844, %v2839
        %2854 = vst.msk [vmem:[%s364 + $0x48] sm:$0xff] %vm2844, %v2840
        %2855 = vst.msk [vmem:[%s364 + $0x50] sm:$0xff] %vm2844, %v2841
        %2856 = vst.msk [vmem:[%s364 + $0x58] sm:$0xff] %vm2844, %v2842
        %2857 = vst.msk [vmem:[%s364 + $0x60] sm:$0xff] %vm2844, %v2843
        %s2858 = smul.u32 13, %s22
        %p2859 = scmp.lt.s32.totalorder %s2858, 25
        %s2860 = scalar_select %p2859, %s2858, 25
        %s2861 = smul.addr %s2860, 8
        %s2862 = scalar_lea.vmem %s9, %s2861
        // Predicated region
        $region65: #{tpu_custom_call.1} parent=55 // pred_check
          %p2863 = pneg %p234
        $region66: #{tpu_custom_call.1} parent=55 // pred_check_branch
          %2865 = sbr.rel (%p2863) target = $region68
        $region67: #{tpu_custom_call.1} parent=55 // pred_region
          %s2866 = smul.u32 13, %s22
        $region68: #{tpu_custom_call.1} parent=55 // pred_fallthru
          _
      $region56: #{tpu_custom_call.1} parent=5 // pred_fallthru
        _
      %p2867 = scmp.le.s32.totalorder 2, %s17
      // Predicated region
      $region69: #{tpu_custom_call.1} parent=5 // pred_check
        %p2868 = pneg %p2867
      $region70: #{tpu_custom_call.1} parent=5 // pred_check_branch
        %2870 = sbr.rel (%p2868) target = $region72
      $region71: #{tpu_custom_call.1} parent=5 // pred_region
        %s2871 = ssub.s32 %s17, 2
        // Predicated region
        $region73: #{tpu_custom_call.1} parent=71 // pred_check
          %p2872 = pneg %p240
        $region74: #{tpu_custom_call.1} parent=71 // pred_check_branch
          %2874 = sbr.rel (%p2872) target = $region76
        $region75: #{tpu_custom_call.1} parent=71 // pred_region
          %s2875 = smul.u32 13, %s23
          %p2876 = scmp.lt.s32.totalorder %s2875, 25
          %s2877 = scalar_select %p2876, %s2875, 25
          %s2878 = smul.addr %s2877, 8
          %s2879 = scalar_lea.vmem %s9, %s2878
        $region76: #{tpu_custom_call.1} parent=71 // pred_fallthru
          _
      $region72: #{tpu_custom_call.1} parent=5 // pred_fallthru
        _
    $region6: #{tpu_custom_call.1} parent=1 // loop_footer
      %s21 = sadd.s32 1, %s17
    $region7: #{tpu_custom_call.1} parent=1 // loop_footer_branch
      %16 = sbr.rel target = $region3
    $region8: #{tpu_custom_call.1} parent=1 // loop_exit
      _
    %2880 = vsyncpa [#allocation3], 1
    %s2881 = scalar_lea.sflag [#allocation3], 1
    %2882 = vsyncpa %s2881, 1
    %2883 = vsyncpa [#allocation5], 1

</llo_original>
